<compile_context>
chip_gen: v5e
topology: v5e:2x2
jax: 0.10.0
libtpu: 0.0.40
codegen_flags: <defaults>
</compile_context>

<pallas_src>
import math
import functools

import jax
import jax.numpy as jnp
from jax.experimental import pallas as pl
from jax.experimental.pallas import tpu as pltpu


def entity_encoder_kernel(x_ref, wqkv_ref, bqkv_ref, wo_ref, bo_ref,
                          gamma_ref, beta_ref, w1_ref, b1_ref, wg_ref, bg_ref,
                          out_ref, *, num_heads, head_dim):
    Bb, L, D = x_ref.shape
    M = Bb * L
    H = num_heads
    hd = head_dim
    mm_dtype = wqkv_ref.dtype                      # f32 or bf16 (wrapper-controlled)

    x_mm = x_ref[...].reshape(M, D)                # matmul-operand dtype
    x_f32 = x_mm.astype(jnp.float32)               # residual path in f32

    # ---- fused in_proj: one [M, D] x [D, 3D] matmul (q already pre-scaled) ----
    qkv = jnp.dot(x_mm, wqkv_ref[...],
                  preferred_element_type=jnp.float32) + bqkv_ref[...]     # [M, 3D] f32

    # ---- split heads with a single relayout; dim-1 order is [q heads|k heads|v heads]
    qkv4 = qkv.reshape(Bb, L, 3 * H, hd).transpose(0, 2, 1, 3)            # (Bb, 3H, L, hd)
    qh = qkv4[:, 0:H].reshape(Bb * H, L, hd).astype(mm_dtype)
    kh = qkv4[:, H:2 * H].reshape(Bb * H, L, hd).astype(mm_dtype)
    vh = qkv4[:, 2 * H:3 * H].reshape(Bb * H, L, hd).astype(mm_dtype)

    # ---- attention over the fused (Bb*H) batch dim ----
    s = jnp.einsum('bld,bmd->blm', qh, kh,
                   preferred_element_type=jnp.float32)                     # (Bb*H, L, L)
    s = s - jnp.max(s, axis=-1, keepdims=True)
    p = jnp.exp(s)
    p = p / jnp.sum(p, axis=-1, keepdims=True)     # exact softmax (torch parity)
    ctx = jnp.einsum('blm,bmd->bld', p.astype(mm_dtype), vh,
                     preferred_element_type=jnp.float32)                   # (Bb*H, L, hd)
    attn = ctx.reshape(Bb, H, L, hd).transpose(0, 2, 1, 3).reshape(M, D)   # one relayout back

    mha = jnp.dot(attn.astype(mm_dtype), wo_ref[...],
                  preferred_element_type=jnp.float32) + bo_ref[...]        # [M, D]

    # ---- residual + LayerNorm over D (dropout = identity; eps keeps any padded
    # rows finite -- see wrapper comment) ----
    y = mha + x_f32
    mean = jnp.mean(y, axis=-1, keepdims=True)
    var = jnp.mean(jnp.square(y - mean), axis=-1, keepdims=True)
    hid = (y - mean) * jax.lax.rsqrt(var + 1e-5) * gamma_ref[...] + beta_ref[...]

    # ---- SelfAttend pooling: softmax(gate(tanh(h1(hid)))) weighted sum over L ----
    h1 = jnp.tanh(jnp.dot(hid.astype(mm_dtype), w1_ref[...],
                          preferred_element_type=jnp.float32) + b1_ref[...])  # [M, HP]
    HP = h1.shape[-1]
    gates = jnp.sum(h1.reshape(Bb, L, HP) * wg_ref[...].reshape(1, 1, HP),
                    axis=-1) + bg_ref[...]                                  # (Bb, L)
    gates = gates - jnp.max(gates, axis=-1, keepdims=True)
    pe = jnp.exp(gates)
    p_attn = pe / jnp.sum(pe, axis=-1, keepdims=True)

    out_ref[...] = jnp.sum(hid.reshape(Bb, L, D) * p_attn[:, :, None],
                           axis=1).astype(out_ref.dtype)


def _full_spec(arr):
    zeros = (0,) * arr.ndim
    return pl.BlockSpec(arr.shape, lambda b, zeros=zeros: zeros)


def _pick_block(B, block_b):
    """Batch-block size.  Prefers (a) no batch padding (Bb divides B), (b) a
    multiple of 8 for sublane-aligned (Bb, D) output blocks, and (c) >= 2 grid
    steps for B >= 16 so both v7x TensorCores get work."""
    target = min(block_b, -(-B // 2)) if B >= 16 else B
    if target >= B:
        return B, B                               # single block, exact fit, no pad
    bb = max(8, (min(target, B) // 8) * 8)
    for cand in range(bb, 7, -8):                 # largest multiple-of-8 divisor of B
        if B % cand == 0:
            return cand, B
    num_blocks = -(-B // bb)                      # rare fallback: pad the batch
    return bb, num_blocks * bb


def entity_encoder(x_emb, params, num_heads, block_b=512, use_bf16_matmul=False):
    """x_emb: [B, L, D] embedded sequences -> pooled [B, D]."""
    B, L, D = x_emb.shape
    assert D % num_heads == 0
    head_dim = D // num_heads
    mm_dtype = jnp.bfloat16 if use_bf16_matmul else jnp.float32

    # --- fuse q/k/v weights; fold 1/sqrt(head_dim) into the q slice (weight-only) ---
    scale = 1.0 / math.sqrt(head_dim)
    wqkv = jnp.concatenate([params['wq_t'] * scale, params['wk_t'], params['wv_t']],
                           axis=1).astype(mm_dtype)                        # [D, 3D]
    bqkv = jnp.concatenate([params['bq'] * scale, params['bk'], params['bv']],
                           axis=1).astype(jnp.float32)                     # [1, 3D]
    wo = params['wo_t'].astype(mm_dtype)

    # --- pad SelfAttend hidden dim (200 -> 256): zero pad columns give tanh(0)=0
    # and zero gate weights, leaving the gate values numerically unchanged ---
    hidden = params['w1_t'].shape[1]
    HP = int(pl.cdiv(hidden, 128)) * 128
    pad_h = HP - hidden
    w1 = jnp.pad(params['w1_t'], ((0, 0), (0, pad_h))).astype(mm_dtype)
    b1 = jnp.pad(params['b1'], ((0, 0), (0, pad_h))).astype(jnp.float32)
    wg = jnp.pad(params['wg'], ((0, 0), (0, pad_h))).astype(jnp.float32)

    x_in = x_emb.astype(mm_dtype)          # bf16 mode halves the input DMA bytes

    # --- batch blocking (no padded x copy unless B has no suitable divisor) ---
    Bb, B_pad = _pick_block(B, block_b)
    num_blocks = B_pad // Bb
    if B_pad != B:
        # Padded rows are all-zero; the LayerNorm eps keeps them finite and the
        # padded outputs are sliced away below -- do not remove the eps or
        # change the pad value to anything NaN-prone.
        x_in = jnp.concatenate(
            [x_in, jnp.zeros((B_pad - B, L, D), x_in.dtype)], axis=0)

    weights = [wqkv, bqkv, wo, params['bo'].astype(jnp.float32),
               params['gamma'].astype(jnp.float32),
               params['beta'].astype(jnp.float32),
               w1, b1, wg, params['bg'].astype(jnp.float32)]

    kernel = functools.partial(entity_encoder_kernel,
                               num_heads=num_heads, head_dim=head_dim)

    weight_bytes = sum(int(w.size) * w.dtype.itemsize for w in weights)
    cost = pl.CostEstimate(
        flops=int(B_pad * L * (2 * D * 3 * D + 2 * D * D + 2 * D * HP)
                  + B_pad * num_heads * 2 * (2 * L * L * head_dim)
                  + B_pad * L * 2 * D),
        transcendentals=int(B_pad * (num_heads * L * L + L * HP + L)),
        bytes_accessed=int(int(x_in.size) * x_in.dtype.itemsize
                           + B_pad * D * 4 + weight_bytes),
    )

    out = pl.pallas_call(
        kernel,
        out_shape=jax.ShapeDtypeStruct((B_pad, D), jnp.float32),
        grid=(num_blocks,),
        in_specs=[pl.BlockSpec((Bb, L, D), lambda b: (b, 0, 0))]
                 + [_full_spec(w) for w in weights],
        out_specs=pl.BlockSpec((Bb, D), lambda b: (b, 0)),
        compiler_params=pltpu.CompilerParams(
            dimension_semantics=("parallel",),
            vmem_limit_bytes=32 * 1024 * 1024),
        cost_estimate=cost,
    )(x_in, *weights)
    return out[:B]


def init_params(key, D, hidden=200):
    ks = jax.random.split(key, 12)
    s = 0.05
    return dict(
        wq_t=jax.random.normal(ks[0], (D, D), jnp.float32) * s,   # in_proj q slice, transposed
        bq=jax.random.normal(ks[1], (1, D), jnp.float32) * s,
        wk_t=jax.random.normal(ks[2], (D, D), jnp.float32) * s,   # in_proj k slice, transposed
        bk=jax.random.normal(ks[3], (1, D), jnp.float32) * s,
        wv_t=jax.random.normal(ks[4], (D, D), jnp.float32) * s,   # in_proj v slice, transposed
        bv=jax.random.normal(ks[5], (1, D), jnp.float32) * s,
        wo_t=jax.random.normal(ks[6], (D, D), jnp.float32) * s,   # out_proj.weight.T
        bo=jax.random.normal(ks[7], (1, D), jnp.float32) * s,     # out_proj.bias
        gamma=jnp.ones((1, D), jnp.float32),                      # LayerNorm weight
        beta=jnp.zeros((1, D), jnp.float32),                      # LayerNorm bias
        w1_t=jax.random.normal(ks[8], (D, hidden), jnp.float32) * s,  # SelfAttend.h1 W.T
        b1=jax.random.normal(ks[9], (1, hidden), jnp.float32) * s,
        wg=jax.random.normal(ks[10], (1, hidden), jnp.float32) * s,   # gate_layer.weight (1,200)
        bg=jax.random.normal(ks[11], (1, 1), jnp.float32) * s,
    )


def reference(x_emb, params, num_heads):
    B, L, D = x_emb.shape
    hd = D // num_heads
    q = x_emb @ params['wq_t'] + params['bq']
    k = x_emb @ params['wk_t'] + params['bk']
    v = x_emb @ params['wv_t'] + params['bv']
    qh = q.reshape(B, L, num_heads, hd).transpose(0, 2, 1, 3)
    kh = k.reshape(B, L, num_heads, hd).transpose(0, 2, 1, 3)
    vh = v.reshape(B, L, num_heads, hd).transpose(0, 2, 1, 3)
    s = jnp.einsum('bhld,bhmd->bhlm', qh, kh) / math.sqrt(hd)
    p = jax.nn.softmax(s, axis=-1)
    o = jnp.einsum('bhlm,bhmd->bhld', p, vh).transpose(0, 2, 1, 3).reshape(B, L, D)
    mha = o @ params['wo_t'] + params['bo']
    y = mha + x_emb
    mean = y.mean(-1, keepdims=True)
    var = ((y - mean) ** 2).mean(-1, keepdims=True)
    hid = (y - mean) / jnp.sqrt(var + 1e-5) * params['gamma'] + params['beta']
    h1 = jnp.tanh(hid @ params['w1_t'] + params['b1'])
    gates = jnp.einsum('blk,k->bl', h1, params['wg'][0]) + params['bg'][0, 0]
    pa = jax.nn.softmax(gates, axis=-1)[..., None]
    return (hid * pa).sum(axis=1)


if __name__ == "__main__":
    # cfg: entity_dim=32, entity_head_num=4, max_entity_len=8, vocab=50
    B, L, D, H = 2, 8, 32, 4
    VOCAB = 50

    key = jax.random.PRNGKey(0)
    k_emb, k_seq, k_par = jax.random.split(key, 3)

    emb_table = jax.random.normal(k_emb, (VOCAB, D), jnp.float32) * 0.1  # cfg.entity_emb
    seqs = jax.random.randint(k_seq, (B, L), 0, VOCAB)
    params = init_params(k_par, D)

    # Embedding lookup is a data-dependent gather -> plain JAX glue.
    x_emb = jnp.take(emb_table, seqs, axis=0)                            # [B, L, D]

    ref = reference(x_emb, params, H)

    # f32 matmul-operand path (default): exact parity with the PyTorch math.
    out = entity_encoder(x_emb, params, H)
    out = jax.block_until_ready(out)
    assert out.shape == (B, D), out.shape
    err = float(jnp.max(jnp.abs(out - ref)))
    assert err < 1e-3, err

    # bf16 matmul-operand perf path (f32 accumulation): looser tolerance.
    out_bf16 = jax.block_until_ready(
        entity_encoder(x_emb, params, H, use_bf16_matmul=True))
    err_bf16 = float(jnp.max(jnp.abs(out_bf16 - ref)))
    assert err_bf16 < 5e-2, err_bf16

    print("KERNEL_OK")
</pallas_src>

<mosaic_0001>
module attributes {stable_mosaic.version = 11 : i64} {
  func.func @entity_encoder_kernel(%arg0: i32, %arg1: memref<2x8x32xf32, #tpu.memory_space<vmem>>, %arg2: memref<32x96xf32, #tpu.memory_space<vmem>>, %arg3: memref<1x96xf32, #tpu.memory_space<vmem>>, %arg4: memref<32x32xf32, #tpu.memory_space<vmem>>, %arg5: memref<1x32xf32, #tpu.memory_space<vmem>>, %arg6: memref<1x32xf32, #tpu.memory_space<vmem>>, %arg7: memref<1x32xf32, #tpu.memory_space<vmem>>, %arg8: memref<32x256xf32, #tpu.memory_space<vmem>>, %arg9: memref<1x256xf32, #tpu.memory_space<vmem>>, %arg10: memref<1x256xf32, #tpu.memory_space<vmem>>, %arg11: memref<1x1xf32, #tpu.memory_space<vmem>>, %arg12: memref<2x32xf32, #tpu.memory_space<vmem>>) attributes {dimension_semantics = [#tpu.dimension_semantics<parallel>], iteration_bounds = array<i64: 1>, scalar_prefetch = 0 : i64, scratch_operands = 0 : i64, tpu.core_type = #tpu.core_type<tc>, window_params = [{transform_indices = @transform_0, window_bounds = array<i64: 2, 8, 32>}, {pipeline_mode = #tpu.pipeline_mode<synchronous>, transform_indices = @transform_1, window_bounds = array<i64: 32, 96>}, {pipeline_mode = #tpu.pipeline_mode<synchronous>, transform_indices = @transform_2, window_bounds = array<i64: 1, 96>}, {pipeline_mode = #tpu.pipeline_mode<synchronous>, transform_indices = @transform_3, window_bounds = array<i64: 32, 32>}, {pipeline_mode = #tpu.pipeline_mode<synchronous>, transform_indices = @transform_4, window_bounds = array<i64: 1, 32>}, {pipeline_mode = #tpu.pipeline_mode<synchronous>, transform_indices = @transform_5, window_bounds = array<i64: 1, 32>}, {pipeline_mode = #tpu.pipeline_mode<synchronous>, transform_indices = @transform_6, window_bounds = array<i64: 1, 32>}, {pipeline_mode = #tpu.pipeline_mode<synchronous>, transform_indices = @transform_7, window_bounds = array<i64: 32, 256>}, {pipeline_mode = #tpu.pipeline_mode<synchronous>, transform_indices = @transform_8, window_bounds = array<i64: 1, 256>}, {pipeline_mode = #tpu.pipeline_mode<synchronous>, transform_indices = @transform_9, window_bounds = array<i64: 1, 256>}, {pipeline_mode = #tpu.pipeline_mode<synchronous>, transform_indices = @transform_10, window_bounds = array<i64: 1, 1>}, {transform_indices = @transform_11, window_bounds = array<i64: 2, 32>}]} {
    %c0 = arith.constant 0 : index
    %c0_0 = arith.constant 0 : index
    %c0_1 = arith.constant 0 : index
    %0 = vector.load %arg1[%c0, %c0_0, %c0_1] : memref<2x8x32xf32, #tpu.memory_space<vmem>>, vector<2x8x32xf32>
    %1 = vector.shape_cast %0 : vector<2x8x32xf32> to vector<16x32xf32>
    %c0_2 = arith.constant 0 : index
    %c0_3 = arith.constant 0 : index
    %2 = vector.load %arg2[%c0_2, %c0_3] : memref<32x96xf32, #tpu.memory_space<vmem>>, vector<32x96xf32>
    %cst = arith.constant dense<0.000000e+00> : vector<16x96xf32>
    %3 = tpu.matmul %1, %2, %cst {dimension_numbers = #tpu.dot_dimension_numbers<[1], [0], [0], [1], [0, 0, 1, 1], [], []>} : vector<16x32xf32>, vector<32x96xf32>, vector<16x96xf32> -> vector<16x96xf32>
    %c0_4 = arith.constant 0 : index
    %c0_5 = arith.constant 0 : index
    %4 = vector.load %arg3[%c0_4, %c0_5] : memref<1x96xf32, #tpu.memory_space<vmem>>, vector<1x96xf32>
    %5 = vector.broadcast %4 : vector<1x96xf32> to vector<16x96xf32>
    %6 = arith.addf %3, %5 : vector<16x96xf32>
    %7 = vector.shape_cast %6 : vector<16x96xf32> to vector<2x8x12x8xf32>
    %8 = tpu.transpose %7, [0, 2, 1, 3] : vector<2x8x12x8xf32> -> vector<2x12x8x8xf32>
    %9 = vector.extract_strided_slice %8 {offsets = [0, 0, 0, 0], sizes = [2, 4, 8, 8], strides = [1, 1, 1, 1]} : vector<2x12x8x8xf32> to vector<2x4x8x8xf32>
    %10 = vector.shape_cast %9 : vector<2x4x8x8xf32> to vector<8x8x8xf32>
    %11 = vector.extract_strided_slice %8 {offsets = [0, 4, 0, 0], sizes = [2, 4, 8, 8], strides = [1, 1, 1, 1]} : vector<2x12x8x8xf32> to vector<2x4x8x8xf32>
    %12 = vector.shape_cast %11 : vector<2x4x8x8xf32> to vector<8x8x8xf32>
    %13 = vector.extract_strided_slice %8 {offsets = [0, 8, 0, 0], sizes = [2, 4, 8, 8], strides = [1, 1, 1, 1]} : vector<2x12x8x8xf32> to vector<2x4x8x8xf32>
    %14 = vector.shape_cast %13 : vector<2x4x8x8xf32> to vector<8x8x8xf32>
    "tpu.trace_start"() <{level = 10 : i32, message = "bld,bmd->blm"}> : () -> ()
    %cst_6 = arith.constant dense<0.000000e+00> : vector<8x8x8xf32>
    %15 = tpu.matmul %10, %12, %cst_6 {dimension_numbers = #tpu.dot_dimension_numbers<[2], [2], [1], [1], [0, 0, 0, 1, 1, 1], [0], [0]>} : vector<8x8x8xf32>, vector<8x8x8xf32>, vector<8x8x8xf32> -> vector<8x8x8xf32>
    "tpu.trace_stop"() : () -> ()
    %cst_7 = arith.constant dense<0xFF800000> : vector<8x8xf32>
    %16 = vector.multi_reduction <maximumf>, %15, %cst_7 [2] : vector<8x8x8xf32> to vector<8x8xf32>
    %17 = vector.shape_cast %16 : vector<8x8xf32> to vector<8x8x1xf32>
    %18 = vector.broadcast %17 : vector<8x8x1xf32> to vector<8x8x8xf32>
    %19 = arith.subf %15, %18 : vector<8x8x8xf32>
    %20 = math.exp %19 : vector<8x8x8xf32>
    %cst_8 = arith.constant dense<0.000000e+00> : vector<8x8xf32>
    %21 = vector.multi_reduction <add>, %20, %cst_8 [2] : vector<8x8x8xf32> to vector<8x8xf32>
    %22 = vector.shape_cast %21 : vector<8x8xf32> to vector<8x8x1xf32>
    %23 = vector.broadcast %22 : vector<8x8x1xf32> to vector<8x8x8xf32>
    %24 = arith.divf %20, %23 : vector<8x8x8xf32>
    "tpu.trace_start"() <{level = 10 : i32, message = "blm,bmd->bld"}> : () -> ()
    %cst_9 = arith.constant dense<0.000000e+00> : vector<8x8x8xf32>
    %25 = tpu.matmul %24, %14, %cst_9 {dimension_numbers = #tpu.dot_dimension_numbers<[2], [1], [1], [2], [0, 0, 0, 1, 1, 2], [0], [0]>} : vector<8x8x8xf32>, vector<8x8x8xf32>, vector<8x8x8xf32> -> vector<8x8x8xf32>
    "tpu.trace_stop"() : () -> ()
    %26 = vector.shape_cast %25 : vector<8x8x8xf32> to vector<2x4x8x8xf32>
    %27 = tpu.transpose %26, [0, 2, 1, 3] : vector<2x4x8x8xf32> -> vector<2x8x4x8xf32>
    %28 = vector.shape_cast %27 : vector<2x8x4x8xf32> to vector<16x32xf32>
    %c0_10 = arith.constant 0 : index
    %c0_11 = arith.constant 0 : index
    %29 = vector.load %arg4[%c0_10, %c0_11] : memref<32x32xf32, #tpu.memory_space<vmem>>, vector<32x32xf32>
    %cst_12 = arith.constant dense<0.000000e+00> : vector<16x32xf32>
    %30 = tpu.matmul %28, %29, %cst_12 {dimension_numbers = #tpu.dot_dimension_numbers<[1], [0], [0], [1], [0, 0, 1, 1], [], []>} : vector<16x32xf32>, vector<32x32xf32>, vector<16x32xf32> -> vector<16x32xf32>
    %c0_13 = arith.constant 0 : index
    %c0_14 = arith.constant 0 : index
    %31 = vector.load %arg5[%c0_13, %c0_14] : memref<1x32xf32, #tpu.memory_space<vmem>>, vector<1x32xf32>
    %32 = vector.broadcast %31 : vector<1x32xf32> to vector<16x32xf32>
    %33 = arith.addf %30, %32 : vector<16x32xf32>
    %34 = arith.addf %33, %1 : vector<16x32xf32>
    %cst_15 = arith.constant dense<0.000000e+00> : vector<16xf32>
    %35 = vector.multi_reduction <add>, %34, %cst_15 [1] : vector<16x32xf32> to vector<16xf32>
    %36 = vector.shape_cast %35 : vector<16xf32> to vector<16x1xf32>
    %cst_16 = arith.constant 3.200000e+01 : f32
    %37 = vector.broadcast %cst_16 : f32 to vector<16x1xf32>
    %38 = arith.divf %36, %37 : vector<16x1xf32>
    %39 = vector.broadcast %38 : vector<16x1xf32> to vector<16x32xf32>
    %40 = arith.subf %34, %39 : vector<16x32xf32>
    %41 = arith.mulf %40, %40 : vector<16x32xf32>
    %cst_17 = arith.constant dense<0.000000e+00> : vector<16xf32>
    %42 = vector.multi_reduction <add>, %41, %cst_17 [1] : vector<16x32xf32> to vector<16xf32>
    %43 = vector.shape_cast %42 : vector<16xf32> to vector<16x1xf32>
    %cst_18 = arith.constant 3.200000e+01 : f32
    %44 = vector.broadcast %cst_18 : f32 to vector<16x1xf32>
    %45 = arith.divf %43, %44 : vector<16x1xf32>
    %46 = vector.broadcast %38 : vector<16x1xf32> to vector<16x32xf32>
    %47 = arith.subf %34, %46 : vector<16x32xf32>
    %cst_19 = arith.constant 9.99999974E-6 : f32
    %48 = vector.broadcast %cst_19 : f32 to vector<16x1xf32>
    %49 = arith.addf %45, %48 : vector<16x1xf32>
    %50 = math.rsqrt %49 : vector<16x1xf32>
    %51 = vector.broadcast %50 : vector<16x1xf32> to vector<16x32xf32>
    %52 = arith.mulf %47, %51 : vector<16x32xf32>
    %c0_20 = arith.constant 0 : index
    %c0_21 = arith.constant 0 : index
    %53 = vector.load %arg6[%c0_20, %c0_21] : memref<1x32xf32, #tpu.memory_space<vmem>>, vector<1x32xf32>
    %54 = vector.broadcast %53 : vector<1x32xf32> to vector<16x32xf32>
    %55 = arith.mulf %52, %54 : vector<16x32xf32>
    %c0_22 = arith.constant 0 : index
    %c0_23 = arith.constant 0 : index
    %56 = vector.load %arg7[%c0_22, %c0_23] : memref<1x32xf32, #tpu.memory_space<vmem>>, vector<1x32xf32>
    %57 = vector.broadcast %56 : vector<1x32xf32> to vector<16x32xf32>
    %58 = arith.addf %55, %57 : vector<16x32xf32>
    %c0_24 = arith.constant 0 : index
    %c0_25 = arith.constant 0 : index
    %59 = vector.load %arg8[%c0_24, %c0_25] : memref<32x256xf32, #tpu.memory_space<vmem>>, vector<32x256xf32>
    %cst_26 = arith.constant dense<0.000000e+00> : vector<16x256xf32>
    %60 = tpu.matmul %58, %59, %cst_26 {dimension_numbers = #tpu.dot_dimension_numbers<[1], [0], [0], [1], [0, 0, 1, 1], [], []>} : vector<16x32xf32>, vector<32x256xf32>, vector<16x256xf32> -> vector<16x256xf32>
    %c0_27 = arith.constant 0 : index
    %c0_28 = arith.constant 0 : index
    %61 = vector.load %arg9[%c0_27, %c0_28] : memref<1x256xf32, #tpu.memory_space<vmem>>, vector<1x256xf32>
    %62 = vector.broadcast %61 : vector<1x256xf32> to vector<16x256xf32>
    %63 = arith.addf %60, %62 : vector<16x256xf32>
    %64 = math.tanh %63 : vector<16x256xf32>
    %65 = vector.shape_cast %64 : vector<16x256xf32> to vector<2x8x256xf32>
    %c0_29 = arith.constant 0 : index
    %c0_30 = arith.constant 0 : index
    %66 = vector.load %arg10[%c0_29, %c0_30] : memref<1x256xf32, #tpu.memory_space<vmem>>, vector<1x256xf32>
    %67 = vector.shape_cast %66 : vector<1x256xf32> to vector<1x1x256xf32>
    %68 = vector.broadcast %67 : vector<1x1x256xf32> to vector<2x8x256xf32>
    %69 = arith.mulf %65, %68 : vector<2x8x256xf32>
    %cst_31 = arith.constant dense<0.000000e+00> : vector<2x8xf32>
    %70 = vector.multi_reduction <add>, %69, %cst_31 [2] : vector<2x8x256xf32> to vector<2x8xf32>
    %c0_32 = arith.constant 0 : index
    %c0_33 = arith.constant 0 : index
    %71 = vector.load %arg11[%c0_32, %c0_33] : memref<1x1xf32, #tpu.memory_space<vmem>>, vector<1x1xf32>
    %72 = vector.broadcast %71 : vector<1x1xf32> to vector<2x8xf32>
    %73 = arith.addf %70, %72 : vector<2x8xf32>
    %cst_34 = arith.constant dense<0xFF800000> : vector<2xf32>
    %74 = vector.multi_reduction <maximumf>, %73, %cst_34 [1] : vector<2x8xf32> to vector<2xf32>
    %75 = vector.shape_cast %74 : vector<2xf32> to vector<2x1xf32>
    %76 = vector.broadcast %75 : vector<2x1xf32> to vector<2x8xf32>
    %77 = arith.subf %73, %76 : vector<2x8xf32>
    %78 = math.exp %77 : vector<2x8xf32>
    %cst_35 = arith.constant dense<0.000000e+00> : vector<2xf32>
    %79 = vector.multi_reduction <add>, %78, %cst_35 [1] : vector<2x8xf32> to vector<2xf32>
    %80 = vector.shape_cast %79 : vector<2xf32> to vector<2x1xf32>
    %81 = vector.broadcast %80 : vector<2x1xf32> to vector<2x8xf32>
    %82 = arith.divf %78, %81 : vector<2x8xf32>
    %83 = vector.shape_cast %58 : vector<16x32xf32> to vector<2x8x32xf32>
    %84 = vector.shape_cast %82 : vector<2x8xf32> to vector<2x8x1xf32>
    %85 = vector.broadcast %84 : vector<2x8x1xf32> to vector<2x8x32xf32>
    %86 = arith.mulf %83, %85 : vector<2x8x32xf32>
    %cst_36 = arith.constant dense<0.000000e+00> : vector<2x32xf32>
    %87 = vector.multi_reduction <add>, %86, %cst_36 [1] : vector<2x8x32xf32> to vector<2x32xf32>
    %c0_37 = arith.constant 0 : index
    %c0_38 = arith.constant 0 : index
    %88 = vector.load %arg12[%c0_37, %c0_38] : memref<2x32xf32, #tpu.memory_space<vmem>>, vector<2x32xf32>
    tpu.vector_store %arg12[%c0_37, %c0_38], %87 {strides = array<i32>} : memref<2x32xf32, #tpu.memory_space<vmem>>, vector<2x32xf32>,
    return
  }
  func.func @transform_0(%arg0: i32) -> (i32, i32, i32) {
    %c0_i32 = arith.constant 0 : i32
    %c0_i32_0 = arith.constant 0 : i32
    %c0_i32_1 = arith.constant 0 : i32
    return %arg0, %c0_i32, %c0_i32_0 : i32, i32, i32
  }
  func.func @transform_1(%arg0: i32) -> (i32, i32) {
    %c0_i32 = arith.constant 0 : i32
    %c0_i32_0 = arith.constant 0 : i32
    %c0_i32_1 = arith.constant 0 : i32
    return %c0_i32, %c0_i32_0 : i32, i32
  }
  func.func @transform_2(%arg0: i32) -> (i32, i32) {
    %c0_i32 = arith.constant 0 : i32
    %c0_i32_0 = arith.constant 0 : i32
    %c0_i32_1 = arith.constant 0 : i32
    return %c0_i32, %c0_i32_0 : i32, i32
  }
  func.func @transform_3(%arg0: i32) -> (i32, i32) {
    %c0_i32 = arith.constant 0 : i32
    %c0_i32_0 = arith.constant 0 : i32
    %c0_i32_1 = arith.constant 0 : i32
    return %c0_i32, %c0_i32_0 : i32, i32
  }
  func.func @transform_4(%arg0: i32) -> (i32, i32) {
    %c0_i32 = arith.constant 0 : i32
    %c0_i32_0 = arith.constant 0 : i32
    %c0_i32_1 = arith.constant 0 : i32
    return %c0_i32, %c0_i32_0 : i32, i32
  }
  func.func @transform_5(%arg0: i32) -> (i32, i32) {
    %c0_i32 = arith.constant 0 : i32
    %c0_i32_0 = arith.constant 0 : i32
    %c0_i32_1 = arith.constant 0 : i32
    return %c0_i32, %c0_i32_0 : i32, i32
  }
  func.func @transform_6(%arg0: i32) -> (i32, i32) {
    %c0_i32 = arith.constant 0 : i32
    %c0_i32_0 = arith.constant 0 : i32
    %c0_i32_1 = arith.constant 0 : i32
    return %c0_i32, %c0_i32_0 : i32, i32
  }
  func.func @transform_7(%arg0: i32) -> (i32, i32) {
    %c0_i32 = arith.constant 0 : i32
    %c0_i32_0 = arith.constant 0 : i32
    %c0_i32_1 = arith.constant 0 : i32
    return %c0_i32, %c0_i32_0 : i32, i32
  }
  func.func @transform_8(%arg0: i32) -> (i32, i32) {
    %c0_i32 = arith.constant 0 : i32
    %c0_i32_0 = arith.constant 0 : i32
    %c0_i32_1 = arith.constant 0 : i32
    return %c0_i32, %c0_i32_0 : i32, i32
  }
  func.func @transform_9(%arg0: i32) -> (i32, i32) {
    %c0_i32 = arith.constant 0 : i32
    %c0_i32_0 = arith.constant 0 : i32
    %c0_i32_1 = arith.constant 0 : i32
    return %c0_i32, %c0_i32_0 : i32, i32
  }
  func.func @transform_10(%arg0: i32) -> (i32, i32) {
    %c0_i32 = arith.constant 0 : i32
    %c0_i32_0 = arith.constant 0 : i32
    %c0_i32_1 = arith.constant 0 : i32
    return %c0_i32, %c0_i32_0 : i32, i32
  }
  func.func @transform_11(%arg0: i32) -> (i32, i32) {
    %c0_i32 = arith.constant 0 : i32
    %c0_i32_0 = arith.constant 0 : i32
    return %arg0, %c0_i32 : i32, i32
  }
}

</mosaic_0001>

<llo_original>
// kernel: tpu_custom_call.1
$region0: #{tpu_custom_call.1}
  #allocation0 [shape = 'u32[]', space=smem, size = 0x4, offset = 0x4, fixed_abs, tag = 'smem constant byte address 0x4 - core index']
  #allocation1 [shape = 'u32[72,128]{1,0:T(1,128)}', space=vmem, size = 0x9000, scoped, tag = 'internal scratch']
  #allocation2 [shape = 'f32[1,1]{1,0:T(1,128)S(1)}', space=vmem, size = 0x200, scoped, tag = 'scoped memory for tpu_custom_call.1']
  %s0 = inlined_call_operand.hbm [shape: f32[2,8,32], index: 0, kind: input, shape index: {}]
  %s1 = inlined_call_operand.hbm [shape: f32[32,96], index: 1, kind: input, shape index: {}]
  %s2 = inlined_call_operand.hbm [shape: f32[1,96], index: 2, kind: input, shape index: {}]
  %s3 = inlined_call_operand.hbm [shape: f32[32,32], index: 3, kind: input, shape index: {}]
  %s4 = inlined_call_operand.vmem [shape: f32[1,32], index: 4, kind: input, shape index: {}]
  %s5 = inlined_call_operand.vmem [shape: f32[1,32], index: 5, kind: input, shape index: {}]
  %s6 = inlined_call_operand.vmem [shape: f32[1,32], index: 6, kind: input, shape index: {}]
  %s7 = inlined_call_operand.hbm [shape: f32[32,256], index: 7, kind: input, shape index: {}]
  %s8 = inlined_call_operand.vmem [shape: f32[1,256], index: 8, kind: input, shape index: {}]
  %s9 = inlined_call_operand.vmem [shape: f32[1,256], index: 9, kind: input, shape index: {}]
  %s10 = inlined_call_operand.<no memory space> [shape: f32[1,1], index: 10, kind: input, shape index: {}]
  %s11 = inlined_call_operand.hbm [shape: f32[2,32], index: 11, kind: output, shape index: {}]
  %s12 = sld [smem:[#allocation0]]
  $region74: #{tpu_custom_call.1} parent=0
    _
  %s14 = ssub.s32 1, %s12
  %s15 = scalar_select 0, %s14, %s12
  %v16 = vstv %s10
  %17 = vst [vmem:[#allocation2] sm:$0x1] %v16
  $region1: #{tpu_custom_call.1} parent=0
    #allocation3 [shape = 'u8[8192]{0}', space=vmem, size = 0x2000, scoped, tag = 'input window, operand 0, single buffered']
    #allocation4 [shape = 's32[1]{0}', space=sflag, size = 0x4, scoped, tag = 'scoped memory for tpu_custom_call.1']
    #allocation5 [shape = 's32[1]{0}', space=sflag, size = 0x4, scoped, tag = 'scoped memory for tpu_custom_call.1']
    #allocation6 [shape = 'u8[16384]{0}', space=vmem, size = 0x4000, scoped, tag = 'input window, operand 1, single buffered']
    #allocation7 [shape = 's32[1]{0}', space=sflag, size = 0x4, scoped, tag = 'scoped memory for tpu_custom_call.1']
    #allocation8 [shape = 'u8[512]{0}', space=vmem, size = 0x400, scoped, tag = 'input window, operand 2, single buffered']
    #allocation9 [shape = 'u8[16384]{0}', space=vmem, size = 0x4000, scoped, tag = 'input window, operand 3, single buffered']
    #allocation10 [shape = 's32[1]{0}', space=sflag, size = 0x4, scoped, tag = 'scoped memory for tpu_custom_call.1']
    #allocation11 [shape = 'u8[32768]{0}', space=vmem, size = 0x8000, scoped, tag = 'input window, operand 7, single buffered']
    #allocation12 [shape = 'u8[1024]{0}', space=vmem, size = 0x400, scoped, tag = 'output window, operand 0, single buffered']
    %18 = vsyncpa [#allocation4], 0
    %19 = vsyncpa [#allocation7], 0
    %20 = vsyncpa [#allocation10], 0
    %21 = vsyncpa [#allocation5], 0
    // Predicated region
    $region2: #{tpu_custom_call.1} parent=1 // pred_check
      _
    $region3: #{tpu_custom_call.1} parent=1 // pred_check_branch
      %23 = sbr.rel (0) target = $region5
    $region4: #{tpu_custom_call.1} parent=1 // pred_region
      %25 = vsyncadd [#allocation4], 0
      %s26 = sshll.u32 %s0, 4
      %s27 = int_to_ptr.hbm [resolvable:$true] %s26
      %s28 = sshll.u32 [#allocation3], 4
      %s29 = int_to_ptr.vmem [resolvable:$true] %s28
      %34 = dma.hbm_to_vmem [thread:$0]  %s27, 256, %s29, [#allocation4], 128, 128, 8
    $region5: #{tpu_custom_call.1} parent=1 // pred_fallthru
      _
    // Predicated region
    $region6: #{tpu_custom_call.1} parent=1 // pred_check
      _
    $region7: #{tpu_custom_call.1} parent=1 // pred_check_branch
      %36 = sbr.rel (0) target = $region9
    $region8: #{tpu_custom_call.1} parent=1 // pred_region
      %38 = vsyncadd [#allocation7], 0
      %s39 = sshll.u32 %s1, 4
      %s40 = int_to_ptr.hbm [resolvable:$true] %s39
      %s41 = sshll.u32 [#allocation6], 4
      %s42 = int_to_ptr.vmem [resolvable:$true] %s41
      %47 = dma.hbm_to_vmem [thread:$0]  %s40, 512, %s42, [#allocation7], 128, 128, 8
    $region9: #{tpu_custom_call.1} parent=1 // pred_fallthru
      _
    // Predicated region
    $region10: #{tpu_custom_call.1} parent=1 // pred_check
      _
    $region11: #{tpu_custom_call.1} parent=1 // pred_check_branch
      %49 = sbr.rel (0) target = $region13
    $region12: #{tpu_custom_call.1} parent=1 // pred_region
      %51 = vsyncadd [#allocation7], 0
      %s53 = sshll.u32 %s2, 4
      %s54 = int_to_ptr.hbm [resolvable:$true] %s53
      %s55 = sshll.u32 [#allocation8], 4
      %s56 = int_to_ptr.vmem [resolvable:$true] %s55
      %58 = dma.hbm_to_vmem [thread:$0]  %s54, 16, %s56, [#allocation7]
    $region13: #{tpu_custom_call.1} parent=1 // pred_fallthru
      _
    // Predicated region
    $region14: #{tpu_custom_call.1} parent=1 // pred_check
      _
    $region15: #{tpu_custom_call.1} parent=1 // pred_check_branch
      %60 = sbr.rel (0) target = $region17
    $region16: #{tpu_custom_call.1} parent=1 // pred_region
      %62 = vsyncadd [#allocation10], 0
      %s63 = sshll.u32 %s3, 4
      %s64 = int_to_ptr.hbm [resolvable:$true] %s63
      %s65 = sshll.u32 [#allocation9], 4
      %s66 = int_to_ptr.vmem [resolvable:$true] %s65
      %71 = dma.hbm_to_vmem [thread:$0]  %s64, 512, %s66, [#allocation10], 128, 128, 8
    $region17: #{tpu_custom_call.1} parent=1 // pred_fallthru
      _
    // Predicated region
    $region18: #{tpu_custom_call.1} parent=1 // pred_check
      _
    $region19: #{tpu_custom_call.1} parent=1 // pred_check_branch
      %73 = sbr.rel (0) target = $region21
    $region20: #{tpu_custom_call.1} parent=1 // pred_region
      _
    $region21: #{tpu_custom_call.1} parent=1 // pred_fallthru
      _
    // Predicated region
    $region22: #{tpu_custom_call.1} parent=1 // pred_check
      _
    $region23: #{tpu_custom_call.1} parent=1 // pred_check_branch
      %75 = sbr.rel (0) target = $region25
    $region24: #{tpu_custom_call.1} parent=1 // pred_region
      _
    $region25: #{tpu_custom_call.1} parent=1 // pred_fallthru
      _
    // Predicated region
    $region26: #{tpu_custom_call.1} parent=1 // pred_check
      _
    $region27: #{tpu_custom_call.1} parent=1 // pred_check_branch
      %77 = sbr.rel (0) target = $region29
    $region28: #{tpu_custom_call.1} parent=1 // pred_region
      _
    $region29: #{tpu_custom_call.1} parent=1 // pred_fallthru
      _
    // Predicated region
    $region30: #{tpu_custom_call.1} parent=1 // pred_check
      _
    $region31: #{tpu_custom_call.1} parent=1 // pred_check_branch
      %79 = sbr.rel (0) target = $region33
    $region32: #{tpu_custom_call.1} parent=1 // pred_region
      %81 = vsyncadd [#allocation10], 0
      %s82 = sshll.u32 %s7, 4
      %s83 = int_to_ptr.hbm [resolvable:$true] %s82
      %s84 = sshll.u32 [#allocation11], 4
      %s85 = int_to_ptr.vmem [resolvable:$true] %s84
      %90 = dma.hbm_to_vmem [thread:$0]  %s83, 1024, %s85, [#allocation10], 256, 256, 16
    $region33: #{tpu_custom_call.1} parent=1 // pred_fallthru
      _
    // Predicated region
    $region34: #{tpu_custom_call.1} parent=1 // pred_check
      _
    $region35: #{tpu_custom_call.1} parent=1 // pred_check_branch
      %92 = sbr.rel (0) target = $region37
    $region36: #{tpu_custom_call.1} parent=1 // pred_region
      _
    $region37: #{tpu_custom_call.1} parent=1 // pred_fallthru
      _
    // Predicated region
    $region38: #{tpu_custom_call.1} parent=1 // pred_check
      _
    $region39: #{tpu_custom_call.1} parent=1 // pred_check_branch
      %94 = sbr.rel (0) target = $region41
    $region40: #{tpu_custom_call.1} parent=1 // pred_region
      _
    $region41: #{tpu_custom_call.1} parent=1 // pred_fallthru
      _
    // Predicated region
    $region42: #{tpu_custom_call.1} parent=1 // pred_check
      _
    $region43: #{tpu_custom_call.1} parent=1 // pred_check_branch
      %96 = sbr.rel (0) target = $region45
    $region44: #{tpu_custom_call.1} parent=1 // pred_region
      _
    $region45: #{tpu_custom_call.1} parent=1 // pred_fallthru
      _
    // Predicated region
    $region46: #{tpu_custom_call.1} parent=1 // pred_check
      _
    $region47: #{tpu_custom_call.1} parent=1 // pred_check_branch
      %98 = sbr.rel (0) target = $region49
    $region48: #{tpu_custom_call.1} parent=1 // pred_region
      %100 = dma.done [#allocation4], 256
    $region49: #{tpu_custom_call.1} parent=1 // pred_fallthru
      _
    // Predicated region
    $region50: #{tpu_custom_call.1} parent=1 // pred_check
      _
    $region51: #{tpu_custom_call.1} parent=1 // pred_check_branch
      %102 = sbr.rel (0) target = $region53
    $region52: #{tpu_custom_call.1} parent=1 // pred_region
      %104 = dma.done [#allocation7], 512
    $region53: #{tpu_custom_call.1} parent=1 // pred_fallthru
      _
    // Predicated region
    $region54: #{tpu_custom_call.1} parent=1 // pred_check
      _
    $region55: #{tpu_custom_call.1} parent=1 // pred_check_branch
      %106 = sbr.rel (0) target = $region57
    $region56: #{tpu_custom_call.1} parent=1 // pred_region
      %108 = dma.done [#allocation7], 16
    $region57: #{tpu_custom_call.1} parent=1 // pred_fallthru
      _
    // Predicated region
    $region58: #{tpu_custom_call.1} parent=1 // pred_check
      _
    $region59: #{tpu_custom_call.1} parent=1 // pred_check_branch
      %110 = sbr.rel (0) target = $region61
    $region60: #{tpu_custom_call.1} parent=1 // pred_region
      %112 = dma.done [#allocation10], 512
    $region61: #{tpu_custom_call.1} parent=1 // pred_fallthru
      _
    // Predicated region
    $region62: #{tpu_custom_call.1} parent=1 // pred_check
      _
    $region63: #{tpu_custom_call.1} parent=1 // pred_check_branch
      %114 = sbr.rel (0) target = $region65
    $region64: #{tpu_custom_call.1} parent=1 // pred_region
      %116 = dma.done [#allocation10], 1024
    $region65: #{tpu_custom_call.1} parent=1 // pred_fallthru
      _
    %v117 = vld [vmem:[#allocation3] sm:$0xff]
    %v118 = vld [vmem:[#allocation3 + $0x8] sm:$0xff]
    %v119 = vld [vmem:[#allocation6] sm:$0xff]
    %v120 = vld [vmem:[#allocation6 + $0x8] sm:$0xff]
    %v121 = vld [vmem:[#allocation6 + $0x10] sm:$0xff]
    %v122 = vld [vmem:[#allocation6 + $0x18] sm:$0xff]
    %v123 = vld [vmem:[#allocation8] sm:$0x1]
    %v125 = vperm.slane %v123, 0
    %vm127 = vcmask 261120
    %v129 = vsel %vm127, %v117, 0
    %v132 = vsel %vm127, %v118, 0
    %134 = vmatpush.msra.mxu0 0.0
    %135 = vmatpush.msra.mxu0 0.0
    %136 = vmatpush.msra.mxu0 0.0
    %137 = vmatpush.msra.mxu0 0.0
    %138 = vmatpush.msra.mxu0 0.0
    %139 = vmatpush.msra.mxu0 0.0
    %140 = vmatpush.msra.mxu0 0.0
    %141 = vmatpush.msra.mxu0 0.0
    %142 = vmatpush.msra.mxu0 0.0
    %143 = vmatpush.msra.mxu0 0.0
    %144 = vmatpush.msra.mxu0 0.0
    %145 = vmatpush.msra.mxu0 0.0
    %146 = vmatpush.msra.mxu0 %v122
    %147 = vmatpush.msra.mxu0 %v121
    %148 = vmatpush.msra.mxu0 %v120
    %149 = vmatpush.msra.mxu0 %v119
    %150 = vmatmul.f32.gmra.mxu0 %v129
    %v151 = vpop.f32.mrf.mxu0
    %v152 = vadd.f32 %v125, %v151
    %153 = vmatmul.f32.gmra.mxu0 %v132
    %v154 = vpop.f32.mrf.mxu0
    %v155 = vadd.f32 %v125, %v154
    %156 = vdwg.mxu0
    %159 = vrot.lane.b32.xlu0 %v152, 120
    %v160 = vpop.permute.xlu0 %159
    %161 = vrot.lane.b32.xlu0 %v155, 120
    %v162 = vpop.permute.xlu0 %161
    %165 = vrot.lane.b32.xlu0 %v152, 112
    %v166 = vpop.permute.xlu0 %165
    %167 = vrot.lane.b32.xlu0 %v155, 112
    %v168 = vpop.permute.xlu0 %167
    %171 = vrot.lane.b32.xlu0 %v152, 104
    %v172 = vpop.permute.xlu0 %171
    %173 = vrot.lane.b32.xlu0 %v155, 104
    %v174 = vpop.permute.xlu0 %173
    %177 = vrot.lane.b32.xlu0 %v152, 96
    %v178 = vpop.permute.xlu0 %177
    %179 = vrot.lane.b32.xlu0 %v155, 96
    %v180 = vpop.permute.xlu0 %179
    %183 = vrot.lane.b32.xlu0 %v152, 88
    %v184 = vpop.permute.xlu0 %183
    %185 = vrot.lane.b32.xlu0 %v155, 88
    %v186 = vpop.permute.xlu0 %185
    %189 = vrot.lane.b32.xlu0 %v152, 80
    %v190 = vpop.permute.xlu0 %189
    %191 = vrot.lane.b32.xlu0 %v155, 80
    %v192 = vpop.permute.xlu0 %191
    %195 = vrot.lane.b32.xlu0 %v152, 72
    %v196 = vpop.permute.xlu0 %195
    %197 = vrot.lane.b32.xlu0 %v155, 72
    %v198 = vpop.permute.xlu0 %197
    %201 = vrot.lane.b32.xlu0 %v152, 64
    %v202 = vpop.permute.xlu0 %201
    %203 = vrot.lane.b32.xlu0 %v155, 64
    %v204 = vpop.permute.xlu0 %203
    %207 = vrot.lane.b32.xlu0 %v152, 56
    %v208 = vpop.permute.xlu0 %207
    %209 = vrot.lane.b32.xlu0 %v155, 56
    %v210 = vpop.permute.xlu0 %209
    %213 = vrot.lane.b32.xlu0 %v152, 48
    %v214 = vpop.permute.xlu0 %213
    %215 = vrot.lane.b32.xlu0 %v155, 48
    %v216 = vpop.permute.xlu0 %215
    %219 = vrot.lane.b32.xlu0 %v152, 40
    %v220 = vpop.permute.xlu0 %219
    %221 = vrot.lane.b32.xlu0 %v155, 40
    %v222 = vpop.permute.xlu0 %221
    %v225 = vrot.slane %v166, 4
    %vm226 = vcmask 1047556
    %v227 = vsel %vm226, %v225, %v152
    %v228 = vrot.slane %v152, 4
    %v229 = vsel %vm226, %v166, %v228
    %v231 = vunpack.c.l.s4 1983009808
    %v232 = vunpack.c.0.s8 %v231
    %v233 = vperm.slane %v227, %v232
    %v235 = vunpack.c.l.s4 1983009808
    %v236 = vunpack.c.0.s8 %v235
    %v237 = vperm.slane %v229, %v236
    %v238 = vrot.slane %v172, 4
    %v239 = vsel %vm226, %v238, %v160
    %v240 = vrot.slane %v160, 4
    %v241 = vsel %vm226, %v172, %v240
    %v243 = vunpack.c.l.s4 1983009808
    %v244 = vunpack.c.0.s8 %v243
    %v245 = vperm.slane %v239, %v244
    %v247 = vunpack.c.l.s4 1983009808
    %v248 = vunpack.c.0.s8 %v247
    %v249 = vperm.slane %v241, %v248
    %v250 = vrot.slane %v190, 4
    %v251 = vsel %vm226, %v250, %v178
    %v252 = vrot.slane %v178, 4
    %v253 = vsel %vm226, %v190, %v252
    %v255 = vunpack.c.l.s4 1983009808
    %v256 = vunpack.c.0.s8 %v255
    %v257 = vperm.slane %v251, %v256
    %v259 = vunpack.c.l.s4 1983009808
    %v260 = vunpack.c.0.s8 %v259
    %v261 = vperm.slane %v253, %v260
    %v262 = vrot.slane %v196, 4
    %v263 = vsel %vm226, %v262, %v184
    %v264 = vrot.slane %v184, 4
    %v265 = vsel %vm226, %v196, %v264
    %v267 = vunpack.c.l.s4 1983009808
    %v268 = vunpack.c.0.s8 %v267
    %v269 = vperm.slane %v263, %v268
    %v271 = vunpack.c.l.s4 1983009808
    %v272 = vunpack.c.0.s8 %v271
    %v273 = vperm.slane %v265, %v272
    %v274 = vrot.slane %v245, 4
    %v275 = vsel %vm226, %v274, %v233
    %v276 = vrot.slane %v233, 4
    %v277 = vsel %vm226, %v245, %v276
    %v279 = vunpack.c.l.s4 1934713408
    %v280 = vunpack.c.0.s8 %v279
    %v281 = vperm.slane %v275, %v280
    %v283 = vunpack.c.l.s4 1934713408
    %v284 = vunpack.c.0.s8 %v283
    %v285 = vperm.slane %v277, %v284
    %v286 = vrot.slane %v249, 4
    %v287 = vsel %vm226, %v286, %v237
    %v288 = vrot.slane %v237, 4
    %v289 = vsel %vm226, %v249, %v288
    %v291 = vunpack.c.l.s4 1934713408
    %v292 = vunpack.c.0.s8 %v291
    %v293 = vperm.slane %v287, %v292
    %v295 = vunpack.c.l.s4 1934713408
    %v296 = vunpack.c.0.s8 %v295
    %v297 = vperm.slane %v289, %v296
    %v298 = vrot.slane %v269, 4
    %v299 = vsel %vm226, %v298, %v257
    %v300 = vrot.slane %v257, 4
    %v301 = vsel %vm226, %v269, %v300
    %v303 = vunpack.c.l.s4 1934713408
    %v304 = vunpack.c.0.s8 %v303
    %v305 = vperm.slane %v299, %v304
    %v307 = vunpack.c.l.s4 1934713408
    %v308 = vunpack.c.0.s8 %v307
    %v309 = vperm.slane %v301, %v308
    %v310 = vrot.slane %v273, 4
    %v311 = vsel %vm226, %v310, %v261
    %v312 = vrot.slane %v261, 4
    %v313 = vsel %vm226, %v273, %v312
    %v315 = vunpack.c.l.s4 1934713408
    %v316 = vunpack.c.0.s8 %v315
    %v317 = vperm.slane %v311, %v316
    %v319 = vunpack.c.l.s4 1934713408
    %v320 = vunpack.c.0.s8 %v319
    %v321 = vperm.slane %v313, %v320
    %v322 = vrot.slane %v305, 4
    %v323 = vsel %vm226, %v322, %v281
    %v324 = vrot.slane %v281, 4
    %v325 = vsel %vm226, %v305, %v324
    %v326 = vrot.slane %v309, 4
    %v327 = vsel %vm226, %v326, %v285
    %v328 = vrot.slane %v285, 4
    %v329 = vsel %vm226, %v309, %v328
    %v330 = vrot.slane %v317, 4
    %v331 = vsel %vm226, %v330, %v293
    %v332 = vrot.slane %v293, 4
    %v333 = vsel %vm226, %v317, %v332
    %v334 = vrot.slane %v321, 4
    %v335 = vsel %vm226, %v334, %v297
    %v336 = vrot.slane %v297, 4
    %v337 = vsel %vm226, %v321, %v336
    %v338 = vrot.slane %v214, 4
    %v339 = vsel %vm226, %v338, %v202
    %v340 = vrot.slane %v202, 4
    %v341 = vsel %vm226, %v214, %v340
    %v343 = vunpack.c.l.s4 1983009808
    %v344 = vunpack.c.0.s8 %v343
    %v345 = vperm.slane %v339, %v344
    %v347 = vunpack.c.l.s4 1983009808
    %v348 = vunpack.c.0.s8 %v347
    %v349 = vperm.slane %v341, %v348
    %v350 = vrot.slane %v220, 4
    %v351 = vsel %vm226, %v350, %v208
    %v352 = vrot.slane %v208, 4
    %v353 = vsel %vm226, %v220, %v352
    %v355 = vunpack.c.l.s4 1983009808
    %v356 = vunpack.c.0.s8 %v355
    %v357 = vperm.slane %v351, %v356
    %v359 = vunpack.c.l.s4 1983009808
    %v360 = vunpack.c.0.s8 %v359
    %v361 = vperm.slane %v353, %v360
    %v362 = vrot.slane %v357, 4
    %v363 = vsel %vm226, %v362, %v345
    %v364 = vrot.slane %v345, 4
    %v365 = vsel %vm226, %v357, %v364
    %v367 = vunpack.c.l.s4 1934713408
    %v368 = vunpack.c.0.s8 %v367
    %v369 = vperm.slane %v363, %v368
    %v371 = vunpack.c.l.s4 1934713408
    %v372 = vunpack.c.0.s8 %v371
    %v373 = vperm.slane %v365, %v372
    %v374 = vrot.slane %v361, 4
    %v375 = vsel %vm226, %v374, %v349
    %v376 = vrot.slane %v349, 4
    %v377 = vsel %vm226, %v361, %v376
    %v379 = vunpack.c.l.s4 1934713408
    %v380 = vunpack.c.0.s8 %v379
    %v381 = vperm.slane %v375, %v380
    %v383 = vunpack.c.l.s4 1934713408
    %v384 = vunpack.c.0.s8 %v383
    %v385 = vperm.slane %v377, %v384
    %v386 = vrot.slane %v369, 4
    %v387 = vsel %vm226, 0.0, %v386
    %v388 = vrot.slane %v373, 4
    %v389 = vsel %vm226, 0.0, %v388
    %v390 = vrot.slane %v381, 4
    %v391 = vsel %vm226, 0.0, %v390
    %v392 = vrot.slane %v385, 4
    %v393 = vsel %vm226, 0.0, %v392
    %v394 = vrot.slane %v168, 4
    %v395 = vsel %vm226, %v394, %v155
    %v396 = vrot.slane %v155, 4
    %v397 = vsel %vm226, %v168, %v396
    %v399 = vunpack.c.l.s4 1983009808
    %v400 = vunpack.c.0.s8 %v399
    %v401 = vperm.slane %v395, %v400
    %v403 = vunpack.c.l.s4 1983009808
    %v404 = vunpack.c.0.s8 %v403
    %v405 = vperm.slane %v397, %v404
    %v406 = vrot.slane %v174, 4
    %v407 = vsel %vm226, %v406, %v162
    %v408 = vrot.slane %v162, 4
    %v409 = vsel %vm226, %v174, %v408
    %v411 = vunpack.c.l.s4 1983009808
    %v412 = vunpack.c.0.s8 %v411
    %v413 = vperm.slane %v407, %v412
    %v415 = vunpack.c.l.s4 1983009808
    %v416 = vunpack.c.0.s8 %v415
    %v417 = vperm.slane %v409, %v416
    %v418 = vrot.slane %v192, 4
    %v419 = vsel %vm226, %v418, %v180
    %v420 = vrot.slane %v180, 4
    %v421 = vsel %vm226, %v192, %v420
    %v423 = vunpack.c.l.s4 1983009808
    %v424 = vunpack.c.0.s8 %v423
    %v425 = vperm.slane %v419, %v424
    %v427 = vunpack.c.l.s4 1983009808
    %v428 = vunpack.c.0.s8 %v427
    %v429 = vperm.slane %v421, %v428
    %v430 = vrot.slane %v198, 4
    %v431 = vsel %vm226, %v430, %v186
    %v432 = vrot.slane %v186, 4
    %v433 = vsel %vm226, %v198, %v432
    %v435 = vunpack.c.l.s4 1983009808
    %v436 = vunpack.c.0.s8 %v435
    %v437 = vperm.slane %v431, %v436
    %v439 = vunpack.c.l.s4 1983009808
    %v440 = vunpack.c.0.s8 %v439
    %v441 = vperm.slane %v433, %v440
    %v442 = vrot.slane %v413, 4
    %v443 = vsel %vm226, %v442, %v401
    %v444 = vrot.slane %v401, 4
    %v445 = vsel %vm226, %v413, %v444
    %v447 = vunpack.c.l.s4 1934713408
    %v448 = vunpack.c.0.s8 %v447
    %v449 = vperm.slane %v443, %v448
    %v451 = vunpack.c.l.s4 1934713408
    %v452 = vunpack.c.0.s8 %v451
    %v453 = vperm.slane %v445, %v452
    %v454 = vrot.slane %v417, 4
    %v455 = vsel %vm226, %v454, %v405
    %v456 = vrot.slane %v405, 4
    %v457 = vsel %vm226, %v417, %v456
    %v459 = vunpack.c.l.s4 1934713408
    %v460 = vunpack.c.0.s8 %v459
    %v461 = vperm.slane %v455, %v460
    %v463 = vunpack.c.l.s4 1934713408
    %v464 = vunpack.c.0.s8 %v463
    %v465 = vperm.slane %v457, %v464
    %v466 = vrot.slane %v437, 4
    %v467 = vsel %vm226, %v466, %v425
    %v468 = vrot.slane %v425, 4
    %v469 = vsel %vm226, %v437, %v468
    %v471 = vunpack.c.l.s4 1934713408
    %v472 = vunpack.c.0.s8 %v471
    %v473 = vperm.slane %v467, %v472
    %v475 = vunpack.c.l.s4 1934713408
    %v476 = vunpack.c.0.s8 %v475
    %v477 = vperm.slane %v469, %v476
    %v478 = vrot.slane %v441, 4
    %v479 = vsel %vm226, %v478, %v429
    %v480 = vrot.slane %v429, 4
    %v481 = vsel %vm226, %v441, %v480
    %v483 = vunpack.c.l.s4 1934713408
    %v484 = vunpack.c.0.s8 %v483
    %v485 = vperm.slane %v479, %v484
    %v487 = vunpack.c.l.s4 1934713408
    %v488 = vunpack.c.0.s8 %v487
    %v489 = vperm.slane %v481, %v488
    %v490 = vrot.slane %v473, 4
    %v491 = vsel %vm226, %v490, %v449
    %v492 = vrot.slane %v449, 4
    %v493 = vsel %vm226, %v473, %v492
    %v494 = vrot.slane %v477, 4
    %v495 = vsel %vm226, %v494, %v453
    %v496 = vrot.slane %v453, 4
    %v497 = vsel %vm226, %v477, %v496
    %v498 = vrot.slane %v485, 4
    %v499 = vsel %vm226, %v498, %v461
    %v500 = vrot.slane %v461, 4
    %v501 = vsel %vm226, %v485, %v500
    %v502 = vrot.slane %v489, 4
    %v503 = vsel %vm226, %v502, %v465
    %v504 = vrot.slane %v465, 4
    %v505 = vsel %vm226, %v489, %v504
    %v506 = vrot.slane %v216, 4
    %v507 = vsel %vm226, %v506, %v204
    %v508 = vrot.slane %v204, 4
    %v509 = vsel %vm226, %v216, %v508
    %v511 = vunpack.c.l.s4 1983009808
    %v512 = vunpack.c.0.s8 %v511
    %v513 = vperm.slane %v507, %v512
    %v515 = vunpack.c.l.s4 1983009808
    %v516 = vunpack.c.0.s8 %v515
    %v517 = vperm.slane %v509, %v516
    %v518 = vrot.slane %v222, 4
    %v519 = vsel %vm226, %v518, %v210
    %v520 = vrot.slane %v210, 4
    %v521 = vsel %vm226, %v222, %v520
    %v523 = vunpack.c.l.s4 1983009808
    %v524 = vunpack.c.0.s8 %v523
    %v525 = vperm.slane %v519, %v524
    %v527 = vunpack.c.l.s4 1983009808
    %v528 = vunpack.c.0.s8 %v527
    %v529 = vperm.slane %v521, %v528
    %v530 = vrot.slane %v525, 4
    %v531 = vsel %vm226, %v530, %v513
    %v532 = vrot.slane %v513, 4
    %v533 = vsel %vm226, %v525, %v532
    %v535 = vunpack.c.l.s4 1934713408
    %v536 = vunpack.c.0.s8 %v535
    %v537 = vperm.slane %v531, %v536
    %v539 = vunpack.c.l.s4 1934713408
    %v540 = vunpack.c.0.s8 %v539
    %v541 = vperm.slane %v533, %v540
    %v542 = vrot.slane %v529, 4
    %v543 = vsel %vm226, %v542, %v517
    %v544 = vrot.slane %v517, 4
    %v545 = vsel %vm226, %v529, %v544
    %v547 = vunpack.c.l.s4 1934713408
    %v548 = vunpack.c.0.s8 %v547
    %v549 = vperm.slane %v543, %v548
    %v551 = vunpack.c.l.s4 1934713408
    %v552 = vunpack.c.0.s8 %v551
    %v553 = vperm.slane %v545, %v552
    %v554 = vrot.slane %v537, 4
    %v555 = vsel %vm226, 0.0, %v554
    %v556 = vrot.slane %v541, 4
    %v557 = vsel %vm226, 0.0, %v556
    %v558 = vrot.slane %v549, 4
    %v559 = vsel %vm226, 0.0, %v558
    %v560 = vrot.slane %v553, 4
    %v561 = vsel %vm226, 0.0, %v560
    %v562 = vrot.slane %v327, 4
    %v563 = vsel %vm226, %v562, %v323
    %v564 = vrot.slane %v323, 4
    %v565 = vsel %vm226, %v327, %v564
    %v567 = vunpack.c.l.s4 1983009808
    %v568 = vunpack.c.0.s8 %v567
    %v569 = vperm.slane %v563, %v568
    %v571 = vunpack.c.l.s4 1983009808
    %v572 = vunpack.c.0.s8 %v571
    %v573 = vperm.slane %v565, %v572
    %v574 = vrot.slane %v329, 4
    %v575 = vsel %vm226, %v574, %v325
    %v576 = vrot.slane %v325, 4
    %v577 = vsel %vm226, %v329, %v576
    %v579 = vunpack.c.l.s4 1983009808
    %v580 = vunpack.c.0.s8 %v579
    %v581 = vperm.slane %v575, %v580
    %v583 = vunpack.c.l.s4 1983009808
    %v584 = vunpack.c.0.s8 %v583
    %v585 = vperm.slane %v577, %v584
    %v586 = vrot.slane %v335, 4
    %v587 = vsel %vm226, %v586, %v331
    %v588 = vrot.slane %v331, 4
    %v589 = vsel %vm226, %v335, %v588
    %v591 = vunpack.c.l.s4 1983009808
    %v592 = vunpack.c.0.s8 %v591
    %v593 = vperm.slane %v587, %v592
    %v595 = vunpack.c.l.s4 1983009808
    %v596 = vunpack.c.0.s8 %v595
    %v597 = vperm.slane %v589, %v596
    %v598 = vrot.slane %v337, 4
    %v599 = vsel %vm226, %v598, %v333
    %v600 = vrot.slane %v333, 4
    %v601 = vsel %vm226, %v337, %v600
    %v603 = vunpack.c.l.s4 1983009808
    %v604 = vunpack.c.0.s8 %v603
    %v605 = vperm.slane %v599, %v604
    %v607 = vunpack.c.l.s4 1983009808
    %v608 = vunpack.c.0.s8 %v607
    %v609 = vperm.slane %v601, %v608
    %v610 = vrot.slane %v581, 4
    %v611 = vsel %vm226, %v610, %v569
    %v612 = vrot.slane %v569, 4
    %v613 = vsel %vm226, %v581, %v612
    %v615 = vunpack.c.l.s4 1934713408
    %v616 = vunpack.c.0.s8 %v615
    %v617 = vperm.slane %v611, %v616
    %v619 = vunpack.c.l.s4 1934713408
    %v620 = vunpack.c.0.s8 %v619
    %v621 = vperm.slane %v613, %v620
    %v622 = vrot.slane %v585, 4
    %v623 = vsel %vm226, %v622, %v573
    %v624 = vrot.slane %v573, 4
    %v625 = vsel %vm226, %v585, %v624
    %v627 = vunpack.c.l.s4 1934713408
    %v628 = vunpack.c.0.s8 %v627
    %v629 = vperm.slane %v623, %v628
    %v631 = vunpack.c.l.s4 1934713408
    %v632 = vunpack.c.0.s8 %v631
    %v633 = vperm.slane %v625, %v632
    %v634 = vrot.slane %v605, 4
    %v635 = vsel %vm226, %v634, %v593
    %v636 = vrot.slane %v593, 4
    %v637 = vsel %vm226, %v605, %v636
    %v639 = vunpack.c.l.s4 1934713408
    %v640 = vunpack.c.0.s8 %v639
    %v641 = vperm.slane %v635, %v640
    %v643 = vunpack.c.l.s4 1934713408
    %v644 = vunpack.c.0.s8 %v643
    %v645 = vperm.slane %v637, %v644
    %v646 = vrot.slane %v609, 4
    %v647 = vsel %vm226, %v646, %v597
    %v648 = vrot.slane %v597, 4
    %v649 = vsel %vm226, %v609, %v648
    %v651 = vunpack.c.l.s4 1934713408
    %v652 = vunpack.c.0.s8 %v651
    %v653 = vperm.slane %v647, %v652
    %v655 = vunpack.c.l.s4 1934713408
    %v656 = vunpack.c.0.s8 %v655
    %v657 = vperm.slane %v649, %v656
    %v658 = vrot.slane %v641, 4
    %v659 = vsel %vm226, %v658, %v617
    %v660 = vrot.slane %v617, 4
    %v661 = vsel %vm226, %v641, %v660
    %v662 = vrot.slane %v645, 4
    %v663 = vsel %vm226, %v662, %v621
    %v664 = vrot.slane %v621, 4
    %v665 = vsel %vm226, %v645, %v664
    %v666 = vrot.slane %v653, 4
    %v667 = vsel %vm226, %v666, %v629
    %v668 = vrot.slane %v629, 4
    %v669 = vsel %vm226, %v653, %v668
    %v670 = vrot.slane %v657, 4
    %v671 = vsel %vm226, %v670, %v633
    %v672 = vrot.slane %v633, 4
    %v673 = vsel %vm226, %v657, %v672
    %v674 = vsel %vm226, %v388, %v369
    %v676 = vunpack.c.l.s4 1983009808
    %v677 = vunpack.c.0.s8 %v676
    %v678 = vperm.slane %v674, %v677
    %v679 = vrot.slane %v389, 4
    %v680 = vsel %vm226, %v679, %v387
    %v682 = vunpack.c.l.s4 1983009808
    %v683 = vunpack.c.0.s8 %v682
    %v684 = vperm.slane %v680, %v683
    %v685 = vsel %vm226, %v392, %v381
    %v687 = vunpack.c.l.s4 1983009808
    %v688 = vunpack.c.0.s8 %v687
    %v689 = vperm.slane %v685, %v688
    %v690 = vrot.slane %v393, 4
    %v691 = vsel %vm226, %v690, %v391
    %v693 = vunpack.c.l.s4 1983009808
    %v694 = vunpack.c.0.s8 %v693
    %v695 = vperm.slane %v691, %v694
    %v696 = vrot.slane %v684, 4
    %v697 = vsel %vm226, %v696, %v678
    %v698 = vrot.slane %v678, 4
    %v699 = vsel %vm226, %v684, %v698
    %v701 = vunpack.c.l.s4 1934713408
    %v702 = vunpack.c.0.s8 %v701
    %v703 = vperm.slane %v697, %v702
    %v705 = vunpack.c.l.s4 1934713408
    %v706 = vunpack.c.0.s8 %v705
    %v707 = vperm.slane %v699, %v706
    %v708 = vrot.slane %v695, 4
    %v709 = vsel %vm226, %v708, %v689
    %v710 = vrot.slane %v689, 4
    %v711 = vsel %vm226, %v695, %v710
    %v713 = vunpack.c.l.s4 1934713408
    %v714 = vunpack.c.0.s8 %v713
    %v715 = vperm.slane %v709, %v714
    %v717 = vunpack.c.l.s4 1934713408
    %v718 = vunpack.c.0.s8 %v717
    %v719 = vperm.slane %v711, %v718
    %v720 = vrot.slane %v715, 4
    %v721 = vsel %vm226, %v720, %v703
    %v722 = vrot.slane %v703, 4
    %v723 = vsel %vm226, %v715, %v722
    %v724 = vrot.slane %v719, 4
    %v725 = vsel %vm226, %v724, %v707
    %v726 = vrot.slane %v707, 4
    %v727 = vsel %vm226, %v719, %v726
    %v728 = vrot.slane %v495, 4
    %v729 = vsel %vm226, %v728, %v491
    %v730 = vrot.slane %v491, 4
    %v731 = vsel %vm226, %v495, %v730
    %v733 = vunpack.c.l.s4 1983009808
    %v734 = vunpack.c.0.s8 %v733
    %v735 = vperm.slane %v729, %v734
    %v737 = vunpack.c.l.s4 1983009808
    %v738 = vunpack.c.0.s8 %v737
    %v739 = vperm.slane %v731, %v738
    %v740 = vrot.slane %v497, 4
    %v741 = vsel %vm226, %v740, %v493
    %v742 = vrot.slane %v493, 4
    %v743 = vsel %vm226, %v497, %v742
    %v745 = vunpack.c.l.s4 1983009808
    %v746 = vunpack.c.0.s8 %v745
    %v747 = vperm.slane %v741, %v746
    %v749 = vunpack.c.l.s4 1983009808
    %v750 = vunpack.c.0.s8 %v749
    %v751 = vperm.slane %v743, %v750
    %v752 = vrot.slane %v503, 4
    %v753 = vsel %vm226, %v752, %v499
    %v754 = vrot.slane %v499, 4
    %v755 = vsel %vm226, %v503, %v754
    %v757 = vunpack.c.l.s4 1983009808
    %v758 = vunpack.c.0.s8 %v757
    %v759 = vperm.slane %v753, %v758
    %v761 = vunpack.c.l.s4 1983009808
    %v762 = vunpack.c.0.s8 %v761
    %v763 = vperm.slane %v755, %v762
    %v764 = vrot.slane %v505, 4
    %v765 = vsel %vm226, %v764, %v501
    %v766 = vrot.slane %v501, 4
    %v767 = vsel %vm226, %v505, %v766
    %v769 = vunpack.c.l.s4 1983009808
    %v770 = vunpack.c.0.s8 %v769
    %v771 = vperm.slane %v765, %v770
    %v773 = vunpack.c.l.s4 1983009808
    %v774 = vunpack.c.0.s8 %v773
    %v775 = vperm.slane %v767, %v774
    %v776 = vrot.slane %v747, 4
    %v777 = vsel %vm226, %v776, %v735
    %v778 = vrot.slane %v735, 4
    %v779 = vsel %vm226, %v747, %v778
    %v781 = vunpack.c.l.s4 1934713408
    %v782 = vunpack.c.0.s8 %v781
    %v783 = vperm.slane %v777, %v782
    %v785 = vunpack.c.l.s4 1934713408
    %v786 = vunpack.c.0.s8 %v785
    %v787 = vperm.slane %v779, %v786
    %v788 = vrot.slane %v751, 4
    %v789 = vsel %vm226, %v788, %v739
    %v790 = vrot.slane %v739, 4
    %v791 = vsel %vm226, %v751, %v790
    %v793 = vunpack.c.l.s4 1934713408
    %v794 = vunpack.c.0.s8 %v793
    %v795 = vperm.slane %v789, %v794
    %v797 = vunpack.c.l.s4 1934713408
    %v798 = vunpack.c.0.s8 %v797
    %v799 = vperm.slane %v791, %v798
    %v800 = vrot.slane %v771, 4
    %v801 = vsel %vm226, %v800, %v759
    %v802 = vrot.slane %v759, 4
    %v803 = vsel %vm226, %v771, %v802
    %v805 = vunpack.c.l.s4 1934713408
    %v806 = vunpack.c.0.s8 %v805
    %v807 = vperm.slane %v801, %v806
    %v809 = vunpack.c.l.s4 1934713408
    %v810 = vunpack.c.0.s8 %v809
    %v811 = vperm.slane %v803, %v810
    %v812 = vrot.slane %v775, 4
    %v813 = vsel %vm226, %v812, %v763
    %v814 = vrot.slane %v763, 4
    %v815 = vsel %vm226, %v775, %v814
    %v817 = vunpack.c.l.s4 1934713408
    %v818 = vunpack.c.0.s8 %v817
    %v819 = vperm.slane %v813, %v818
    %v821 = vunpack.c.l.s4 1934713408
    %v822 = vunpack.c.0.s8 %v821
    %v823 = vperm.slane %v815, %v822
    %v824 = vrot.slane %v807, 4
    %v825 = vsel %vm226, %v824, %v783
    %v826 = vrot.slane %v783, 4
    %v827 = vsel %vm226, %v807, %v826
    %v828 = vrot.slane %v811, 4
    %v829 = vsel %vm226, %v828, %v787
    %v830 = vrot.slane %v787, 4
    %v831 = vsel %vm226, %v811, %v830
    %v832 = vrot.slane %v819, 4
    %v833 = vsel %vm226, %v832, %v795
    %v834 = vrot.slane %v795, 4
    %v835 = vsel %vm226, %v819, %v834
    %v836 = vrot.slane %v823, 4
    %v837 = vsel %vm226, %v836, %v799
    %v838 = vrot.slane %v799, 4
    %v839 = vsel %vm226, %v823, %v838
    %v840 = vsel %vm226, %v556, %v537
    %v842 = vunpack.c.l.s4 1983009808
    %v843 = vunpack.c.0.s8 %v842
    %v844 = vperm.slane %v840, %v843
    %v845 = vrot.slane %v557, 4
    %v846 = vsel %vm226, %v845, %v555
    %v848 = vunpack.c.l.s4 1983009808
    %v849 = vunpack.c.0.s8 %v848
    %v850 = vperm.slane %v846, %v849
    %v851 = vsel %vm226, %v560, %v549
    %v853 = vunpack.c.l.s4 1983009808
    %v854 = vunpack.c.0.s8 %v853
    %v855 = vperm.slane %v851, %v854
    %v856 = vrot.slane %v561, 4
    %v857 = vsel %vm226, %v856, %v559
    %v859 = vunpack.c.l.s4 1983009808
    %v860 = vunpack.c.0.s8 %v859
    %v861 = vperm.slane %v857, %v860
    %v862 = vrot.slane %v850, 4
    %v863 = vsel %vm226, %v862, %v844
    %v864 = vrot.slane %v844, 4
    %v865 = vsel %vm226, %v850, %v864
    %v867 = vunpack.c.l.s4 1934713408
    %v868 = vunpack.c.0.s8 %v867
    %v869 = vperm.slane %v863, %v868
    %v871 = vunpack.c.l.s4 1934713408
    %v872 = vunpack.c.0.s8 %v871
    %v873 = vperm.slane %v865, %v872
    %v874 = vrot.slane %v861, 4
    %v875 = vsel %vm226, %v874, %v855
    %v876 = vrot.slane %v855, 4
    %v877 = vsel %vm226, %v861, %v876
    %v879 = vunpack.c.l.s4 1934713408
    %v880 = vunpack.c.0.s8 %v879
    %v881 = vperm.slane %v875, %v880
    %v883 = vunpack.c.l.s4 1934713408
    %v884 = vunpack.c.0.s8 %v883
    %v885 = vperm.slane %v877, %v884
    %v886 = vrot.slane %v881, 4
    %v887 = vsel %vm226, %v886, %v869
    %v888 = vrot.slane %v869, 4
    %v889 = vsel %vm226, %v881, %v888
    %v890 = vrot.slane %v885, 4
    %v891 = vsel %vm226, %v890, %v873
    %v892 = vrot.slane %v873, 4
    %v893 = vsel %vm226, %v885, %v892
    %vm894 = vcmask 64512
    %v896 = vsel %vm894, %v659, 0
    %v899 = vsel %vm894, %v667, 0
    %901 = vmatpush.xpose.msra.mxu0 0.0
    %902 = vmatpush.xpose.msra.mxu0 0.0
    %903 = vmatpush.xpose.msra.mxu0 0.0
    %904 = vmatpush.xpose.msra.mxu0 0.0
    %905 = vmatpush.xpose.msra.mxu0 0.0
    %906 = vmatpush.xpose.msra.mxu0 0.0
    %907 = vmatpush.xpose.msra.mxu0 0.0
    %908 = vmatpush.xpose.msra.mxu0 0.0
    %909 = vmatpush.xpose.msra.mxu0 0.0
    %910 = vmatpush.xpose.msra.mxu0 0.0
    %911 = vmatpush.xpose.msra.mxu0 0.0
    %912 = vmatpush.xpose.msra.mxu0 0.0
    %913 = vmatpush.xpose.msra.mxu0 0.0
    %914 = vmatpush.xpose.msra.mxu0 0.0
    %915 = vmatpush.xpose.msra.mxu0 0.0
    %916 = vmatpush.xpose.msra.mxu0 %v899
    %917 = vmatmul.f32.gmra.mxu0 %v896
    %v918 = vpop.f32.mrf.mxu0
    %v919 = vadd.f32 0.0, %v918
    %920 = vdwg.mxu0
    %v922 = vsel %vm894, %v661, 0
    %v925 = vsel %vm894, %v669, 0
    %927 = vmatpush.xpose.msra.mxu0 0.0
    %928 = vmatpush.xpose.msra.mxu0 0.0
    %929 = vmatpush.xpose.msra.mxu0 0.0
    %930 = vmatpush.xpose.msra.mxu0 0.0
    %931 = vmatpush.xpose.msra.mxu0 0.0
    %932 = vmatpush.xpose.msra.mxu0 0.0
    %933 = vmatpush.xpose.msra.mxu0 0.0
    %934 = vmatpush.xpose.msra.mxu0 0.0
    %935 = vmatpush.xpose.msra.mxu0 0.0
    %936 = vmatpush.xpose.msra.mxu0 0.0
    %937 = vmatpush.xpose.msra.mxu0 0.0
    %938 = vmatpush.xpose.msra.mxu0 0.0
    %939 = vmatpush.xpose.msra.mxu0 0.0
    %940 = vmatpush.xpose.msra.mxu0 0.0
    %941 = vmatpush.xpose.msra.mxu0 0.0
    %942 = vmatpush.xpose.msra.mxu0 %v925
    %943 = vmatmul.f32.gmra.mxu0 %v922
    %v944 = vpop.f32.mrf.mxu0
    %v945 = vadd.f32 0.0, %v944
    %946 = vdwg.mxu0
    %v948 = vsel %vm894, %v663, 0
    %v951 = vsel %vm894, %v671, 0
    %953 = vmatpush.xpose.msra.mxu0 0.0
    %954 = vmatpush.xpose.msra.mxu0 0.0
    %955 = vmatpush.xpose.msra.mxu0 0.0
    %956 = vmatpush.xpose.msra.mxu0 0.0
    %957 = vmatpush.xpose.msra.mxu0 0.0
    %958 = vmatpush.xpose.msra.mxu0 0.0
    %959 = vmatpush.xpose.msra.mxu0 0.0
    %960 = vmatpush.xpose.msra.mxu0 0.0
    %961 = vmatpush.xpose.msra.mxu0 0.0
    %962 = vmatpush.xpose.msra.mxu0 0.0
    %963 = vmatpush.xpose.msra.mxu0 0.0
    %964 = vmatpush.xpose.msra.mxu0 0.0
    %965 = vmatpush.xpose.msra.mxu0 0.0
    %966 = vmatpush.xpose.msra.mxu0 0.0
    %967 = vmatpush.xpose.msra.mxu0 0.0
    %968 = vmatpush.xpose.msra.mxu0 %v951
    %969 = vmatmul.f32.gmra.mxu0 %v948
    %v970 = vpop.f32.mrf.mxu0
    %v971 = vadd.f32 0.0, %v970
    %972 = vdwg.mxu0
    %v974 = vsel %vm894, %v665, 0
    %v977 = vsel %vm894, %v673, 0
    %979 = vmatpush.xpose.msra.mxu0 0.0
    %980 = vmatpush.xpose.msra.mxu0 0.0
    %981 = vmatpush.xpose.msra.mxu0 0.0
    %982 = vmatpush.xpose.msra.mxu0 0.0
    %983 = vmatpush.xpose.msra.mxu0 0.0
    %984 = vmatpush.xpose.msra.mxu0 0.0
    %985 = vmatpush.xpose.msra.mxu0 0.0
    %986 = vmatpush.xpose.msra.mxu0 0.0
    %987 = vmatpush.xpose.msra.mxu0 0.0
    %988 = vmatpush.xpose.msra.mxu0 0.0
    %989 = vmatpush.xpose.msra.mxu0 0.0
    %990 = vmatpush.xpose.msra.mxu0 0.0
    %991 = vmatpush.xpose.msra.mxu0 0.0
    %992 = vmatpush.xpose.msra.mxu0 0.0
    %993 = vmatpush.xpose.msra.mxu0 0.0
    %994 = vmatpush.xpose.msra.mxu0 %v977
    %995 = vmatmul.f32.gmra.mxu0 %v974
    %v996 = vpop.f32.mrf.mxu0
    %v997 = vadd.f32 0.0, %v996
    %998 = vdwg.mxu0
    %v1000 = vsel %vm894, %v825, 0
    %v1003 = vsel %vm894, %v833, 0
    %1005 = vmatpush.xpose.msra.mxu0 0.0
    %1006 = vmatpush.xpose.msra.mxu0 0.0
    %1007 = vmatpush.xpose.msra.mxu0 0.0
    %1008 = vmatpush.xpose.msra.mxu0 0.0
    %1009 = vmatpush.xpose.msra.mxu0 0.0
    %1010 = vmatpush.xpose.msra.mxu0 0.0
    %1011 = vmatpush.xpose.msra.mxu0 0.0
    %1012 = vmatpush.xpose.msra.mxu0 0.0
    %1013 = vmatpush.xpose.msra.mxu0 0.0
    %1014 = vmatpush.xpose.msra.mxu0 0.0
    %1015 = vmatpush.xpose.msra.mxu0 0.0
    %1016 = vmatpush.xpose.msra.mxu0 0.0
    %1017 = vmatpush.xpose.msra.mxu0 0.0
    %1018 = vmatpush.xpose.msra.mxu0 0.0
    %1019 = vmatpush.xpose.msra.mxu0 0.0
    %1020 = vmatpush.xpose.msra.mxu0 %v1003
    %1021 = vmatmul.f32.gmra.mxu0 %v1000
    %v1022 = vpop.f32.mrf.mxu0
    %v1023 = vadd.f32 0.0, %v1022
    %1024 = vdwg.mxu0
    %v1026 = vsel %vm894, %v827, 0
    %v1029 = vsel %vm894, %v835, 0
    %1031 = vmatpush.xpose.msra.mxu0 0.0
    %1032 = vmatpush.xpose.msra.mxu0 0.0
    %1033 = vmatpush.xpose.msra.mxu0 0.0
    %1034 = vmatpush.xpose.msra.mxu0 0.0
    %1035 = vmatpush.xpose.msra.mxu0 0.0
    %1036 = vmatpush.xpose.msra.mxu0 0.0
    %1037 = vmatpush.xpose.msra.mxu0 0.0
    %1038 = vmatpush.xpose.msra.mxu0 0.0
    %1039 = vmatpush.xpose.msra.mxu0 0.0
    %1040 = vmatpush.xpose.msra.mxu0 0.0
    %1041 = vmatpush.xpose.msra.mxu0 0.0
    %1042 = vmatpush.xpose.msra.mxu0 0.0
    %1043 = vmatpush.xpose.msra.mxu0 0.0
    %1044 = vmatpush.xpose.msra.mxu0 0.0
    %1045 = vmatpush.xpose.msra.mxu0 0.0
    %1046 = vmatpush.xpose.msra.mxu0 %v1029
    %1047 = vmatmul.f32.gmra.mxu0 %v1026
    %v1048 = vpop.f32.mrf.mxu0
    %v1049 = vadd.f32 0.0, %v1048
    %1050 = vdwg.mxu0
    %v1052 = vsel %vm894, %v829, 0
    %v1055 = vsel %vm894, %v837, 0
    %1057 = vmatpush.xpose.msra.mxu0 0.0
    %1058 = vmatpush.xpose.msra.mxu0 0.0
    %1059 = vmatpush.xpose.msra.mxu0 0.0
    %1060 = vmatpush.xpose.msra.mxu0 0.0
    %1061 = vmatpush.xpose.msra.mxu0 0.0
    %1062 = vmatpush.xpose.msra.mxu0 0.0
    %1063 = vmatpush.xpose.msra.mxu0 0.0
    %1064 = vmatpush.xpose.msra.mxu0 0.0
    %1065 = vmatpush.xpose.msra.mxu0 0.0
    %1066 = vmatpush.xpose.msra.mxu0 0.0
    %1067 = vmatpush.xpose.msra.mxu0 0.0
    %1068 = vmatpush.xpose.msra.mxu0 0.0
    %1069 = vmatpush.xpose.msra.mxu0 0.0
    %1070 = vmatpush.xpose.msra.mxu0 0.0
    %1071 = vmatpush.xpose.msra.mxu0 0.0
    %1072 = vmatpush.xpose.msra.mxu0 %v1055
    %1073 = vmatmul.f32.gmra.mxu0 %v1052
    %v1074 = vpop.f32.mrf.mxu0
    %v1075 = vadd.f32 0.0, %v1074
    %1076 = vdwg.mxu0
    %v1078 = vsel %vm894, %v831, 0
    %v1081 = vsel %vm894, %v839, 0
    %1083 = vmatpush.xpose.msra.mxu0 0.0
    %1084 = vmatpush.xpose.msra.mxu0 0.0
    %1085 = vmatpush.xpose.msra.mxu0 0.0
    %1086 = vmatpush.xpose.msra.mxu0 0.0
    %1087 = vmatpush.xpose.msra.mxu0 0.0
    %1088 = vmatpush.xpose.msra.mxu0 0.0
    %1089 = vmatpush.xpose.msra.mxu0 0.0
    %1090 = vmatpush.xpose.msra.mxu0 0.0
    %1091 = vmatpush.xpose.msra.mxu0 0.0
    %1092 = vmatpush.xpose.msra.mxu0 0.0
    %1093 = vmatpush.xpose.msra.mxu0 0.0
    %1094 = vmatpush.xpose.msra.mxu0 0.0
    %1095 = vmatpush.xpose.msra.mxu0 0.0
    %1096 = vmatpush.xpose.msra.mxu0 0.0
    %1097 = vmatpush.xpose.msra.mxu0 0.0
    %1098 = vmatpush.xpose.msra.mxu0 %v1081
    %1099 = vmatmul.f32.gmra.mxu0 %v1078
    %v1100 = vpop.f32.mrf.mxu0
    %v1101 = vadd.f32 0.0, %v1100
    %1102 = vdwg.mxu0
    %v1103 = vsel %vm894, %v919, -inf
    %1104 = vmax.xlane.f32.xlu0 %v1103
    %v1105 = vpop.xlane.xlu0 %1104
    %v1106 = vsel %vm894, %v945, -inf
    %1107 = vmax.xlane.f32.xlu0 %v1106
    %v1108 = vpop.xlane.xlu0 %1107
    %v1109 = vsel %vm894, %v971, -inf
    %1110 = vmax.xlane.f32.xlu0 %v1109
    %v1111 = vpop.xlane.xlu0 %1110
    %v1112 = vsel %vm894, %v997, -inf
    %1113 = vmax.xlane.f32.xlu0 %v1112
    %v1114 = vpop.xlane.xlu0 %1113
    %v1115 = vsel %vm894, %v1023, -inf
    %1116 = vmax.xlane.f32.xlu0 %v1115
    %v1117 = vpop.xlane.xlu0 %1116
    %v1118 = vsel %vm894, %v1049, -inf
    %1119 = vmax.xlane.f32.xlu0 %v1118
    %v1120 = vpop.xlane.xlu0 %1119
    %v1121 = vsel %vm894, %v1075, -inf
    %1122 = vmax.xlane.f32.xlu0 %v1121
    %v1123 = vpop.xlane.xlu0 %1122
    %v1124 = vsel %vm894, %v1101, -inf
    %1125 = vmax.xlane.f32.xlu0 %v1124
    %v1126 = vpop.xlane.xlu0 %1125
    %v1127 = vsub.f32 %v919, %v1105
    %v1128 = vsub.f32 %v945, %v1108
    %v1129 = vsub.f32 %v971, %v1111
    %v1130 = vsub.f32 %v997, %v1114
    %v1131 = vsub.f32 %v1023, %v1117
    %v1132 = vsub.f32 %v1049, %v1120
    %v1133 = vsub.f32 %v1075, %v1123
    %v1134 = vsub.f32 %v1101, %v1126
    %v1135 = vmul.f32 %v1127, 1.442695
    %v1136 = vpow.pop %v1135
    %v1137 = vmul.f32 %v1128, 1.442695
    %v1138 = vpow.pop %v1137
    %v1139 = vmul.f32 %v1129, 1.442695
    %v1140 = vpow.pop %v1139
    %v1141 = vmul.f32 %v1130, 1.442695
    %v1142 = vpow.pop %v1141
    %v1143 = vmul.f32 %v1131, 1.442695
    %v1144 = vpow.pop %v1143
    %v1145 = vmul.f32 %v1132, 1.442695
    %v1146 = vpow.pop %v1145
    %v1147 = vmul.f32 %v1133, 1.442695
    %v1148 = vpow.pop %v1147
    %v1149 = vmul.f32 %v1134, 1.442695
    %v1150 = vpow.pop %v1149
    %v1151 = vsel %vm894, %v1136, 0.0
    %1152 = vadd.xlane.f32.xlu0 %v1151
    %v1153 = vpop.xlane.xlu0 %1152
    %v1154 = vsel %vm894, %v1138, 0.0
    %1155 = vadd.xlane.f32.xlu0 %v1154
    %v1156 = vpop.xlane.xlu0 %1155
    %v1157 = vsel %vm894, %v1140, 0.0
    %1158 = vadd.xlane.f32.xlu0 %v1157
    %v1159 = vpop.xlane.xlu0 %1158
    %v1160 = vsel %vm894, %v1142, 0.0
    %1161 = vadd.xlane.f32.xlu0 %v1160
    %v1162 = vpop.xlane.xlu0 %1161
    %v1163 = vsel %vm894, %v1144, 0.0
    %1164 = vadd.xlane.f32.xlu0 %v1163
    %v1165 = vpop.xlane.xlu0 %1164
    %v1166 = vsel %vm894, %v1146, 0.0
    %1167 = vadd.xlane.f32.xlu0 %v1166
    %v1168 = vpop.xlane.xlu0 %1167
    %v1169 = vsel %vm894, %v1148, 0.0
    %1170 = vadd.xlane.f32.xlu0 %v1169
    %v1171 = vpop.xlane.xlu0 %1170
    %v1172 = vsel %vm894, %v1150, 0.0
    %1173 = vadd.xlane.f32.xlu0 %v1172
    %v1174 = vpop.xlane.xlu0 %1173
    %v1175 = vrcp.pop %v1153
    %v1176 = vmul.f32 %v1153, %v1175
    %v1177 = vsub.f32 1.0, %v1176
    %v1178 = vmul.f32 %v1175, %v1177
    %v1179 = vadd.f32 %v1175, %v1178
    %vm1180 = vweird.f32 %v1153
    %vm1181 = vweird.f32 %v1175
    %vm1182 = vmor %vm1180, %vm1181
    %v1183 = vsel %vm1182, %v1175, %v1179
    %v1184 = vand.u32 2147483647, %v1153
    %vm1185 = vcmp.eq.f32.partialorder %v1184, 8.507059e+37
    %v1186 = vand.u32 %v1153, 2147483648
    %v1187 = vor.u32 1.1754944e-38, %v1186
    %v1188 = vsel %vm1185, %v1187, %v1183
    %v1189 = vmul.f32 %v1136, %v1188
    %v1190 = vrcp.pop %v1156
    %v1191 = vmul.f32 %v1156, %v1190
    %v1192 = vsub.f32 1.0, %v1191
    %v1193 = vmul.f32 %v1190, %v1192
    %v1194 = vadd.f32 %v1190, %v1193
    %vm1195 = vweird.f32 %v1156
    %vm1196 = vweird.f32 %v1190
    %vm1197 = vmor %vm1195, %vm1196
    %v1198 = vsel %vm1197, %v1190, %v1194
    %v1199 = vand.u32 2147483647, %v1156
    %vm1200 = vcmp.eq.f32.partialorder %v1199, 8.507059e+37
    %v1201 = vand.u32 %v1156, 2147483648
    %v1202 = vor.u32 1.1754944e-38, %v1201
    %v1203 = vsel %vm1200, %v1202, %v1198
    %v1204 = vmul.f32 %v1138, %v1203
    %v1205 = vrcp.pop %v1159
    %v1206 = vmul.f32 %v1159, %v1205
    %v1207 = vsub.f32 1.0, %v1206
    %v1208 = vmul.f32 %v1205, %v1207
    %v1209 = vadd.f32 %v1205, %v1208
    %vm1210 = vweird.f32 %v1159
    %vm1211 = vweird.f32 %v1205
    %vm1212 = vmor %vm1210, %vm1211
    %v1213 = vsel %vm1212, %v1205, %v1209
    %v1214 = vand.u32 2147483647, %v1159
    %vm1215 = vcmp.eq.f32.partialorder %v1214, 8.507059e+37
    %v1216 = vand.u32 %v1159, 2147483648
    %v1217 = vor.u32 1.1754944e-38, %v1216
    %v1218 = vsel %vm1215, %v1217, %v1213
    %v1219 = vmul.f32 %v1140, %v1218
    %v1220 = vrcp.pop %v1162
    %v1221 = vmul.f32 %v1162, %v1220
    %v1222 = vsub.f32 1.0, %v1221
    %v1223 = vmul.f32 %v1220, %v1222
    %v1224 = vadd.f32 %v1220, %v1223
    %vm1225 = vweird.f32 %v1162
    %vm1226 = vweird.f32 %v1220
    %vm1227 = vmor %vm1225, %vm1226
    %v1228 = vsel %vm1227, %v1220, %v1224
    %v1229 = vand.u32 2147483647, %v1162
    %vm1230 = vcmp.eq.f32.partialorder %v1229, 8.507059e+37
    %v1231 = vand.u32 %v1162, 2147483648
    %v1232 = vor.u32 1.1754944e-38, %v1231
    %v1233 = vsel %vm1230, %v1232, %v1228
    %v1234 = vmul.f32 %v1142, %v1233
    %v1235 = vrcp.pop %v1165
    %v1236 = vmul.f32 %v1165, %v1235
    %v1237 = vsub.f32 1.0, %v1236
    %v1238 = vmul.f32 %v1235, %v1237
    %v1239 = vadd.f32 %v1235, %v1238
    %vm1240 = vweird.f32 %v1165
    %vm1241 = vweird.f32 %v1235
    %vm1242 = vmor %vm1240, %vm1241
    %v1243 = vsel %vm1242, %v1235, %v1239
    %v1244 = vand.u32 2147483647, %v1165
    %vm1245 = vcmp.eq.f32.partialorder %v1244, 8.507059e+37
    %v1246 = vand.u32 %v1165, 2147483648
    %v1247 = vor.u32 1.1754944e-38, %v1246
    %v1248 = vsel %vm1245, %v1247, %v1243
    %v1249 = vmul.f32 %v1144, %v1248
    %v1250 = vrcp.pop %v1168
    %v1251 = vmul.f32 %v1168, %v1250
    %v1252 = vsub.f32 1.0, %v1251
    %v1253 = vmul.f32 %v1250, %v1252
    %v1254 = vadd.f32 %v1250, %v1253
    %vm1255 = vweird.f32 %v1168
    %vm1256 = vweird.f32 %v1250
    %vm1257 = vmor %vm1255, %vm1256
    %v1258 = vsel %vm1257, %v1250, %v1254
    %v1259 = vand.u32 2147483647, %v1168
    %vm1260 = vcmp.eq.f32.partialorder %v1259, 8.507059e+37
    %v1261 = vand.u32 %v1168, 2147483648
    %v1262 = vor.u32 1.1754944e-38, %v1261
    %v1263 = vsel %vm1260, %v1262, %v1258
    %v1264 = vmul.f32 %v1146, %v1263
    %v1265 = vrcp.pop %v1171
    %v1266 = vmul.f32 %v1171, %v1265
    %v1267 = vsub.f32 1.0, %v1266
    %v1268 = vmul.f32 %v1265, %v1267
    %v1269 = vadd.f32 %v1265, %v1268
    %vm1270 = vweird.f32 %v1171
    %vm1271 = vweird.f32 %v1265
    %vm1272 = vmor %vm1270, %vm1271
    %v1273 = vsel %vm1272, %v1265, %v1269
    %v1274 = vand.u32 2147483647, %v1171
    %vm1275 = vcmp.eq.f32.partialorder %v1274, 8.507059e+37
    %v1276 = vand.u32 %v1171, 2147483648
    %v1277 = vor.u32 1.1754944e-38, %v1276
    %v1278 = vsel %vm1275, %v1277, %v1273
    %v1279 = vmul.f32 %v1148, %v1278
    %v1280 = vrcp.pop %v1174
    %v1281 = vmul.f32 %v1174, %v1280
    %v1282 = vsub.f32 1.0, %v1281
    %v1283 = vmul.f32 %v1280, %v1282
    %v1284 = vadd.f32 %v1280, %v1283
    %vm1285 = vweird.f32 %v1174
    %vm1286 = vweird.f32 %v1280
    %vm1287 = vmor %vm1285, %vm1286
    %v1288 = vsel %vm1287, %v1280, %v1284
    %v1289 = vand.u32 2147483647, %v1174
    %vm1290 = vcmp.eq.f32.partialorder %v1289, 8.507059e+37
    %v1291 = vand.u32 %v1174, 2147483648
    %v1292 = vor.u32 1.1754944e-38, %v1291
    %v1293 = vsel %vm1290, %v1292, %v1288
    %v1294 = vmul.f32 %v1150, %v1293
    %v1296 = vsel %vm894, %v1189, 0
    %1298 = vmatpush.msra.mxu0 0.0
    %1299 = vmatpush.msra.mxu0 0.0
    %1300 = vmatpush.msra.mxu0 0.0
    %1301 = vmatpush.msra.mxu0 0.0
    %1302 = vmatpush.msra.mxu0 0.0
    %1303 = vmatpush.msra.mxu0 0.0
    %1304 = vmatpush.msra.mxu0 0.0
    %1305 = vmatpush.msra.mxu0 0.0
    %1306 = vmatpush.msra.mxu0 0.0
    %1307 = vmatpush.msra.mxu0 0.0
    %1308 = vmatpush.msra.mxu0 0.0
    %1309 = vmatpush.msra.mxu0 0.0
    %1310 = vmatpush.msra.mxu0 0.0
    %1311 = vmatpush.msra.mxu0 0.0
    %1312 = vmatpush.msra.mxu0 0.0
    %1313 = vmatpush.msra.mxu0 %v721
    %1314 = vmatmul.f32.gmra.mxu0 %v1296
    %v1315 = vpop.f32.mrf.mxu0
    %v1316 = vadd.f32 0.0, %v1315
    %1317 = vdwg.mxu0
    %v1319 = vsel %vm894, %v1204, 0
    %1321 = vmatpush.msra.mxu0 0.0
    %1322 = vmatpush.msra.mxu0 0.0
    %1323 = vmatpush.msra.mxu0 0.0
    %1324 = vmatpush.msra.mxu0 0.0
    %1325 = vmatpush.msra.mxu0 0.0
    %1326 = vmatpush.msra.mxu0 0.0
    %1327 = vmatpush.msra.mxu0 0.0
    %1328 = vmatpush.msra.mxu0 0.0
    %1329 = vmatpush.msra.mxu0 0.0
    %1330 = vmatpush.msra.mxu0 0.0
    %1331 = vmatpush.msra.mxu0 0.0
    %1332 = vmatpush.msra.mxu0 0.0
    %1333 = vmatpush.msra.mxu0 0.0
    %1334 = vmatpush.msra.mxu0 0.0
    %1335 = vmatpush.msra.mxu0 0.0
    %1336 = vmatpush.msra.mxu0 %v723
    %1337 = vmatmul.f32.gmra.mxu0 %v1319
    %v1338 = vpop.f32.mrf.mxu0
    %v1339 = vadd.f32 0.0, %v1338
    %1340 = vdwg.mxu0
    %v1342 = vsel %vm894, %v1219, 0
    %1344 = vmatpush.msra.mxu0 0.0
    %1345 = vmatpush.msra.mxu0 0.0
    %1346 = vmatpush.msra.mxu0 0.0
    %1347 = vmatpush.msra.mxu0 0.0
    %1348 = vmatpush.msra.mxu0 0.0
    %1349 = vmatpush.msra.mxu0 0.0
    %1350 = vmatpush.msra.mxu0 0.0
    %1351 = vmatpush.msra.mxu0 0.0
    %1352 = vmatpush.msra.mxu0 0.0
    %1353 = vmatpush.msra.mxu0 0.0
    %1354 = vmatpush.msra.mxu0 0.0
    %1355 = vmatpush.msra.mxu0 0.0
    %1356 = vmatpush.msra.mxu0 0.0
    %1357 = vmatpush.msra.mxu0 0.0
    %1358 = vmatpush.msra.mxu0 0.0
    %1359 = vmatpush.msra.mxu0 %v725
    %1360 = vmatmul.f32.gmra.mxu0 %v1342
    %v1361 = vpop.f32.mrf.mxu0
    %v1362 = vadd.f32 0.0, %v1361
    %1363 = vdwg.mxu0
    %v1365 = vsel %vm894, %v1234, 0
    %1367 = vmatpush.msra.mxu0 0.0
    %1368 = vmatpush.msra.mxu0 0.0
    %1369 = vmatpush.msra.mxu0 0.0
    %1370 = vmatpush.msra.mxu0 0.0
    %1371 = vmatpush.msra.mxu0 0.0
    %1372 = vmatpush.msra.mxu0 0.0
    %1373 = vmatpush.msra.mxu0 0.0
    %1374 = vmatpush.msra.mxu0 0.0
    %1375 = vmatpush.msra.mxu0 0.0
    %1376 = vmatpush.msra.mxu0 0.0
    %1377 = vmatpush.msra.mxu0 0.0
    %1378 = vmatpush.msra.mxu0 0.0
    %1379 = vmatpush.msra.mxu0 0.0
    %1380 = vmatpush.msra.mxu0 0.0
    %1381 = vmatpush.msra.mxu0 0.0
    %1382 = vmatpush.msra.mxu0 %v727
    %1383 = vmatmul.f32.gmra.mxu0 %v1365
    %v1384 = vpop.f32.mrf.mxu0
    %v1385 = vadd.f32 0.0, %v1384
    %1386 = vdwg.mxu0
    %v1388 = vsel %vm894, %v1249, 0
    %1390 = vmatpush.msra.mxu0 0.0
    %1391 = vmatpush.msra.mxu0 0.0
    %1392 = vmatpush.msra.mxu0 0.0
    %1393 = vmatpush.msra.mxu0 0.0
    %1394 = vmatpush.msra.mxu0 0.0
    %1395 = vmatpush.msra.mxu0 0.0
    %1396 = vmatpush.msra.mxu0 0.0
    %1397 = vmatpush.msra.mxu0 0.0
    %1398 = vmatpush.msra.mxu0 0.0
    %1399 = vmatpush.msra.mxu0 0.0
    %1400 = vmatpush.msra.mxu0 0.0
    %1401 = vmatpush.msra.mxu0 0.0
    %1402 = vmatpush.msra.mxu0 0.0
    %1403 = vmatpush.msra.mxu0 0.0
    %1404 = vmatpush.msra.mxu0 0.0
    %1405 = vmatpush.msra.mxu0 %v887
    %1406 = vmatmul.f32.gmra.mxu0 %v1388
    %v1407 = vpop.f32.mrf.mxu0
    %v1408 = vadd.f32 0.0, %v1407
    %1409 = vdwg.mxu0
    %v1411 = vsel %vm894, %v1264, 0
    %1413 = vmatpush.msra.mxu0 0.0
    %1414 = vmatpush.msra.mxu0 0.0
    %1415 = vmatpush.msra.mxu0 0.0
    %1416 = vmatpush.msra.mxu0 0.0
    %1417 = vmatpush.msra.mxu0 0.0
    %1418 = vmatpush.msra.mxu0 0.0
    %1419 = vmatpush.msra.mxu0 0.0
    %1420 = vmatpush.msra.mxu0 0.0
    %1421 = vmatpush.msra.mxu0 0.0
    %1422 = vmatpush.msra.mxu0 0.0
    %1423 = vmatpush.msra.mxu0 0.0
    %1424 = vmatpush.msra.mxu0 0.0
    %1425 = vmatpush.msra.mxu0 0.0
    %1426 = vmatpush.msra.mxu0 0.0
    %1427 = vmatpush.msra.mxu0 0.0
    %1428 = vmatpush.msra.mxu0 %v889
    %1429 = vmatmul.f32.gmra.mxu0 %v1411
    %v1430 = vpop.f32.mrf.mxu0
    %v1431 = vadd.f32 0.0, %v1430
    %1432 = vdwg.mxu0
    %v1434 = vsel %vm894, %v1279, 0
    %1436 = vmatpush.msra.mxu0 0.0
    %1437 = vmatpush.msra.mxu0 0.0
    %1438 = vmatpush.msra.mxu0 0.0
    %1439 = vmatpush.msra.mxu0 0.0
    %1440 = vmatpush.msra.mxu0 0.0
    %1441 = vmatpush.msra.mxu0 0.0
    %1442 = vmatpush.msra.mxu0 0.0
    %1443 = vmatpush.msra.mxu0 0.0
    %1444 = vmatpush.msra.mxu0 0.0
    %1445 = vmatpush.msra.mxu0 0.0
    %1446 = vmatpush.msra.mxu0 0.0
    %1447 = vmatpush.msra.mxu0 0.0
    %1448 = vmatpush.msra.mxu0 0.0
    %1449 = vmatpush.msra.mxu0 0.0
    %1450 = vmatpush.msra.mxu0 0.0
    %1451 = vmatpush.msra.mxu0 %v891
    %1452 = vmatmul.f32.gmra.mxu0 %v1434
    %v1453 = vpop.f32.mrf.mxu0
    %v1454 = vadd.f32 0.0, %v1453
    %1455 = vdwg.mxu0
    %v1457 = vsel %vm894, %v1294, 0
    %1459 = vmatpush.msra.mxu0 0.0
    %1460 = vmatpush.msra.mxu0 0.0
    %1461 = vmatpush.msra.mxu0 0.0
    %1462 = vmatpush.msra.mxu0 0.0
    %1463 = vmatpush.msra.mxu0 0.0
    %1464 = vmatpush.msra.mxu0 0.0
    %1465 = vmatpush.msra.mxu0 0.0
    %1466 = vmatpush.msra.mxu0 0.0
    %1467 = vmatpush.msra.mxu0 0.0
    %1468 = vmatpush.msra.mxu0 0.0
    %1469 = vmatpush.msra.mxu0 0.0
    %1470 = vmatpush.msra.mxu0 0.0
    %1471 = vmatpush.msra.mxu0 0.0
    %1472 = vmatpush.msra.mxu0 0.0
    %1473 = vmatpush.msra.mxu0 0.0
    %1474 = vmatpush.msra.mxu0 %v893
    %1475 = vmatmul.f32.gmra.mxu0 %v1457
    %v1476 = vpop.f32.mrf.mxu0
    %v1477 = vadd.f32 0.0, %v1476
    %1478 = vdwg.mxu0
    %v1479 = vrot.slane %v1362, 4
    %v1480 = vsel %vm226, %v1479, %v1316
    %v1481 = vrot.slane %v1316, 4
    %v1482 = vsel %vm226, %v1362, %v1481
    %v1484 = vunpack.c.l.s4 1983009808
    %v1485 = vunpack.c.0.s8 %v1484
    %v1486 = vperm.slane %v1480, %v1485
    %v1488 = vunpack.c.l.s4 1983009808
    %v1489 = vunpack.c.0.s8 %v1488
    %v1490 = vperm.slane %v1482, %v1489
    %v1491 = vrot.slane %v1385, 4
    %v1492 = vsel %vm226, %v1491, %v1339
    %v1493 = vrot.slane %v1339, 4
    %v1494 = vsel %vm226, %v1385, %v1493
    %v1496 = vunpack.c.l.s4 1983009808
    %v1497 = vunpack.c.0.s8 %v1496
    %v1498 = vperm.slane %v1492, %v1497
    %v1500 = vunpack.c.l.s4 1983009808
    %v1501 = vunpack.c.0.s8 %v1500
    %v1502 = vperm.slane %v1494, %v1501
    %v1503 = vrot.slane %v1498, 4
    %v1504 = vsel %vm226, %v1503, %v1486
    %v1505 = vrot.slane %v1486, 4
    %v1506 = vsel %vm226, %v1498, %v1505
    %v1508 = vunpack.c.l.s4 1934713408
    %v1509 = vunpack.c.0.s8 %v1508
    %v1510 = vperm.slane %v1504, %v1509
    %v1512 = vunpack.c.l.s4 1934713408
    %v1513 = vunpack.c.0.s8 %v1512
    %v1514 = vperm.slane %v1506, %v1513
    %v1515 = vrot.slane %v1502, 4
    %v1516 = vsel %vm226, %v1515, %v1490
    %v1517 = vrot.slane %v1490, 4
    %v1518 = vsel %vm226, %v1502, %v1517
    %v1520 = vunpack.c.l.s4 1934713408
    %v1521 = vunpack.c.0.s8 %v1520
    %v1522 = vperm.slane %v1516, %v1521
    %v1524 = vunpack.c.l.s4 1934713408
    %v1525 = vunpack.c.0.s8 %v1524
    %v1526 = vperm.slane %v1518, %v1525
    %v1527 = vrot.slane %v1510, 4
    %v1528 = vsel %vm226, 0.0, %v1527
    %v1529 = vrot.slane %v1514, 4
    %v1530 = vsel %vm226, 0.0, %v1529
    %v1531 = vrot.slane %v1522, 4
    %v1532 = vsel %vm226, 0.0, %v1531
    %v1533 = vrot.slane %v1526, 4
    %v1534 = vsel %vm226, 0.0, %v1533
    %v1535 = vrot.slane %v1454, 4
    %v1536 = vsel %vm226, %v1535, %v1408
    %v1537 = vrot.slane %v1408, 4
    %v1538 = vsel %vm226, %v1454, %v1537
    %v1540 = vunpack.c.l.s4 1983009808
    %v1541 = vunpack.c.0.s8 %v1540
    %v1542 = vperm.slane %v1536, %v1541
    %v1544 = vunpack.c.l.s4 1983009808
    %v1545 = vunpack.c.0.s8 %v1544
    %v1546 = vperm.slane %v1538, %v1545
    %v1547 = vrot.slane %v1477, 4
    %v1548 = vsel %vm226, %v1547, %v1431
    %v1549 = vrot.slane %v1431, 4
    %v1550 = vsel %vm226, %v1477, %v1549
    %v1552 = vunpack.c.l.s4 1983009808
    %v1553 = vunpack.c.0.s8 %v1552
    %v1554 = vperm.slane %v1548, %v1553
    %v1556 = vunpack.c.l.s4 1983009808
    %v1557 = vunpack.c.0.s8 %v1556
    %v1558 = vperm.slane %v1550, %v1557
    %v1559 = vrot.slane %v1554, 4
    %v1560 = vsel %vm226, %v1559, %v1542
    %v1561 = vrot.slane %v1542, 4
    %v1562 = vsel %vm226, %v1554, %v1561
    %v1564 = vunpack.c.l.s4 1934713408
    %v1565 = vunpack.c.0.s8 %v1564
    %v1566 = vperm.slane %v1560, %v1565
    %v1568 = vunpack.c.l.s4 1934713408
    %v1569 = vunpack.c.0.s8 %v1568
    %v1570 = vperm.slane %v1562, %v1569
    %v1571 = vrot.slane %v1558, 4
    %v1572 = vsel %vm226, %v1571, %v1546
    %v1573 = vrot.slane %v1546, 4
    %v1574 = vsel %vm226, %v1558, %v1573
    %v1576 = vunpack.c.l.s4 1934713408
    %v1577 = vunpack.c.0.s8 %v1576
    %v1578 = vperm.slane %v1572, %v1577
    %v1580 = vunpack.c.l.s4 1934713408
    %v1581 = vunpack.c.0.s8 %v1580
    %v1582 = vperm.slane %v1574, %v1581
    %v1583 = vrot.slane %v1566, 4
    %v1584 = vsel %vm226, 0.0, %v1583
    %v1585 = vrot.slane %v1570, 4
    %v1586 = vsel %vm226, 0.0, %v1585
    %v1587 = vrot.slane %v1578, 4
    %v1588 = vsel %vm226, 0.0, %v1587
    %v1589 = vrot.slane %v1582, 4
    %v1590 = vsel %vm226, 0.0, %v1589
    %v1591 = vsel %vm226, %v1529, %v1510
    %v1593 = vunpack.c.l.s4 1983009808
    %v1594 = vunpack.c.0.s8 %v1593
    %v1595 = vperm.slane %v1591, %v1594
    %v1596 = vrot.slane %v1530, 4
    %v1597 = vsel %vm226, %v1596, %v1528
    %v1599 = vunpack.c.l.s4 1983009808
    %v1600 = vunpack.c.0.s8 %v1599
    %v1601 = vperm.slane %v1597, %v1600
    %v1602 = vsel %vm226, %v1533, %v1522
    %v1604 = vunpack.c.l.s4 1983009808
    %v1605 = vunpack.c.0.s8 %v1604
    %v1606 = vperm.slane %v1602, %v1605
    %v1607 = vrot.slane %v1534, 4
    %v1608 = vsel %vm226, %v1607, %v1532
    %v1610 = vunpack.c.l.s4 1983009808
    %v1611 = vunpack.c.0.s8 %v1610
    %v1612 = vperm.slane %v1608, %v1611
    %v1613 = vrot.slane %v1601, 4
    %v1614 = vsel %vm226, %v1613, %v1595
    %v1615 = vrot.slane %v1595, 4
    %v1616 = vsel %vm226, %v1601, %v1615
    %v1618 = vunpack.c.l.s4 1934713408
    %v1619 = vunpack.c.0.s8 %v1618
    %v1620 = vperm.slane %v1614, %v1619
    %v1622 = vunpack.c.l.s4 1934713408
    %v1623 = vunpack.c.0.s8 %v1622
    %v1624 = vperm.slane %v1616, %v1623
    %v1625 = vrot.slane %v1612, 4
    %v1626 = vsel %vm226, %v1625, %v1606
    %v1627 = vrot.slane %v1606, 4
    %v1628 = vsel %vm226, %v1612, %v1627
    %v1630 = vunpack.c.l.s4 1934713408
    %v1631 = vunpack.c.0.s8 %v1630
    %v1632 = vperm.slane %v1626, %v1631
    %v1634 = vunpack.c.l.s4 1934713408
    %v1635 = vunpack.c.0.s8 %v1634
    %v1636 = vperm.slane %v1628, %v1635
    %v1637 = vrot.slane %v1632, 4
    %v1638 = vsel %vm226, %v1637, %v1620
    %v1639 = vrot.slane %v1620, 4
    %v1640 = vsel %vm226, %v1632, %v1639
    %v1641 = vrot.slane %v1636, 4
    %v1642 = vsel %vm226, %v1641, %v1624
    %v1643 = vrot.slane %v1624, 4
    %v1644 = vsel %vm226, %v1636, %v1643
    %v1645 = vsel %vm226, %v1585, %v1566
    %v1647 = vunpack.c.l.s4 1983009808
    %v1648 = vunpack.c.0.s8 %v1647
    %v1649 = vperm.slane %v1645, %v1648
    %v1650 = vrot.slane %v1586, 4
    %v1651 = vsel %vm226, %v1650, %v1584
    %v1653 = vunpack.c.l.s4 1983009808
    %v1654 = vunpack.c.0.s8 %v1653
    %v1655 = vperm.slane %v1651, %v1654
    %v1656 = vsel %vm226, %v1589, %v1578
    %v1658 = vunpack.c.l.s4 1983009808
    %v1659 = vunpack.c.0.s8 %v1658
    %v1660 = vperm.slane %v1656, %v1659
    %v1661 = vrot.slane %v1590, 4
    %v1662 = vsel %vm226, %v1661, %v1588
    %v1664 = vunpack.c.l.s4 1983009808
    %v1665 = vunpack.c.0.s8 %v1664
    %v1666 = vperm.slane %v1662, %v1665
    %v1667 = vrot.slane %v1655, 4
    %v1668 = vsel %vm226, %v1667, %v1649
    %v1669 = vrot.slane %v1649, 4
    %v1670 = vsel %vm226, %v1655, %v1669
    %v1672 = vunpack.c.l.s4 1934713408
    %v1673 = vunpack.c.0.s8 %v1672
    %v1674 = vperm.slane %v1668, %v1673
    %v1676 = vunpack.c.l.s4 1934713408
    %v1677 = vunpack.c.0.s8 %v1676
    %v1678 = vperm.slane %v1670, %v1677
    %v1679 = vrot.slane %v1666, 4
    %v1680 = vsel %vm226, %v1679, %v1660
    %v1681 = vrot.slane %v1660, 4
    %v1682 = vsel %vm226, %v1666, %v1681
    %v1684 = vunpack.c.l.s4 1934713408
    %v1685 = vunpack.c.0.s8 %v1684
    %v1686 = vperm.slane %v1680, %v1685
    %v1688 = vunpack.c.l.s4 1934713408
    %v1689 = vunpack.c.0.s8 %v1688
    %v1690 = vperm.slane %v1682, %v1689
    %v1691 = vrot.slane %v1686, 4
    %v1692 = vsel %vm226, %v1691, %v1674
    %v1693 = vrot.slane %v1674, 4
    %v1694 = vsel %vm226, %v1686, %v1693
    %v1695 = vrot.slane %v1690, 4
    %v1696 = vsel %vm226, %v1695, %v1678
    %v1697 = vrot.slane %v1678, 4
    %v1698 = vsel %vm226, %v1690, %v1697
    %1701 = vrot.lane.b32.xlu0 %v1640, 8
    %v1702 = vpop.permute.xlu0 %1701
    %1703 = vrot.lane.b32.xlu0 %v1694, 8
    %v1704 = vpop.permute.xlu0 %1703
    %1709 = vrot.lane.b32.xlu0 %v1642, 16
    %v1710 = vpop.permute.xlu0 %1709
    %1711 = vrot.lane.b32.xlu0 %v1696, 16
    %v1712 = vpop.permute.xlu0 %1711
    %1717 = vrot.lane.b32.xlu0 %v1644, 24
    %v1718 = vpop.permute.xlu0 %1717
    %1719 = vrot.lane.b32.xlu0 %v1698, 24
    %v1720 = vpop.permute.xlu0 %1719
    %v1723 = vsel %vm894, %v1638, %v1702
    %v1724 = vsel %vm894, %v1692, %v1704
    %vm1725 = vcmask 130048
    %v1726 = vsel %vm1725, %v1723, %v1710
    %v1727 = vsel %vm1725, %v1724, %v1712
    %vm1728 = vcmask 195584
    %v1729 = vsel %vm1728, %v1726, %v1718
    %v1730 = vsel %vm1728, %v1727, %v1720
    %v1731 = vld [vmem:[#allocation9] sm:$0xff]
    %v1732 = vld [vmem:[#allocation9 + $0x8] sm:$0xff]
    %v1733 = vld [vmem:[#allocation9 + $0x10] sm:$0xff]
    %v1734 = vld [vmem:[#allocation9 + $0x18] sm:$0xff]
    %v1735 = vld [vmem:[%s4] sm:$0x1]
    %v1737 = vperm.slane %v1735, 0
    %v1740 = vsel %vm127, %v1729, 0
    %v1743 = vsel %vm127, %v1730, 0
    %1745 = vmatpush.msra.mxu0 0.0
    %1746 = vmatpush.msra.mxu0 0.0
    %1747 = vmatpush.msra.mxu0 0.0
    %1748 = vmatpush.msra.mxu0 0.0
    %1749 = vmatpush.msra.mxu0 0.0
    %1750 = vmatpush.msra.mxu0 0.0
    %1751 = vmatpush.msra.mxu0 0.0
    %1752 = vmatpush.msra.mxu0 0.0
    %1753 = vmatpush.msra.mxu0 0.0
    %1754 = vmatpush.msra.mxu0 0.0
    %1755 = vmatpush.msra.mxu0 0.0
    %1756 = vmatpush.msra.mxu0 0.0
    %1757 = vmatpush.msra.mxu0 %v1734
    %1758 = vmatpush.msra.mxu0 %v1733
    %1759 = vmatpush.msra.mxu0 %v1732
    %1760 = vmatpush.msra.mxu0 %v1731
    %1761 = vmatmul.f32.gmra.mxu0 %v1740
    %v1762 = vpop.f32.mrf.mxu0
    %v1763 = vadd.f32 %v1737, %v1762
    %1764 = vmatmul.f32.gmra.mxu0 %v1743
    %v1765 = vpop.f32.mrf.mxu0
    %v1766 = vadd.f32 %v1737, %v1765
    %1767 = vdwg.mxu0
    %v1768 = vadd.f32 %v1763, %v117
    %v1769 = vadd.f32 %v1766, %v118
    %v1770 = vsel %vm127, %v1768, 0.0
    %1771 = vadd.xlane.f32.xlu0 %v1770
    %v1772 = vpop.xlane.xlu0 %1771
    %v1773 = vsel %vm127, %v1769, 0.0
    %1774 = vadd.xlane.f32.xlu0 %v1773
    %v1775 = vpop.xlane.xlu0 %1774
    %v1776 = vrcp.pop 32.0
    %v1777 = vmul.f32 32.0, %v1776
    %v1778 = vsub.f32 1.0, %v1777
    %v1779 = vmul.f32 %v1776, %v1778
    %v1780 = vadd.f32 %v1776, %v1779
    %vm1781 = vweird.f32 %v1776
    %v1782 = vsel %vm1781, %v1776, %v1780
    %v1783 = vmul.f32 %v1772, %v1782
    %v1784 = vmul.f32 %v1775, %v1782
    %v1785 = vsub.f32 %v1768, %v1783
    %v1786 = vsub.f32 %v1769, %v1784
    %v1787 = vmul.f32 %v1785, %v1785
    %v1788 = vmul.f32 %v1786, %v1786
    %v1789 = vsel %vm127, %v1787, 0.0
    %1790 = vadd.xlane.f32.xlu0 %v1789
    %v1791 = vpop.xlane.xlu0 %1790
    %v1792 = vsel %vm127, %v1788, 0.0
    %1793 = vadd.xlane.f32.xlu0 %v1792
    %v1794 = vpop.xlane.xlu0 %1793
    %v1795 = vmul.f32 %v1791, %v1782
    %v1796 = vmul.f32 %v1794, %v1782
    %v1797 = vadd.f32 %v1795, 1e-05
    %v1798 = vadd.f32 %v1796, 1e-05
    %v1799 = vrsqrt.pop %v1797
    %v1800 = vmul.f32 %v1799, %v1797
    %v1801 = vmul.f32 %v1800, %v1799
    %v1802 = vmul.f32 0.5, %v1801
    %v1803 = vsub.f32 1.5, %v1802
    %v1804 = vmul.f32 %v1799, %v1803
    %vm1805 = vweird.f32 %v1797
    %vm1806 = vweird.f32 %v1799
    %vm1807 = vmor %vm1805, %vm1806
    %v1808 = vsel %vm1807, %v1799, %v1804
    %v1809 = vrsqrt.pop %v1798
    %v1810 = vmul.f32 %v1809, %v1798
    %v1811 = vmul.f32 %v1810, %v1809
    %v1812 = vmul.f32 0.5, %v1811
    %v1813 = vsub.f32 1.5, %v1812
    %v1814 = vmul.f32 %v1809, %v1813
    %vm1815 = vweird.f32 %v1798
    %vm1816 = vweird.f32 %v1809
    %vm1817 = vmor %vm1815, %vm1816
    %v1818 = vsel %vm1817, %v1809, %v1814
    %v1819 = vmul.f32 %v1785, %v1808
    %v1820 = vmul.f32 %v1786, %v1818
    %v1821 = vld [vmem:[%s5] sm:$0x1]
    %v1823 = vperm.slane %v1821, 0
    %v1825 = vmul.f32 %v1819, %v1823
    %v1826 = vmul.f32 %v1820, %v1823
    %v1827 = vld [vmem:[%s6] sm:$0x1]
    %v1829 = vperm.slane %v1827, 0
    %v1831 = vadd.f32 %v1825, %v1829
    %v1832 = vadd.f32 %v1826, %v1829
    %v1833 = vld [vmem:[#allocation11] sm:$0xff]
    %v1834 = vld [vmem:[#allocation11 + $0x8] sm:$0xff]
    %v1835 = vld [vmem:[#allocation11 + $0x10] sm:$0xff]
    %v1836 = vld [vmem:[#allocation11 + $0x18] sm:$0xff]
    %v1837 = vld [vmem:[#allocation11 + $0x20] sm:$0xff]
    %v1838 = vld [vmem:[#allocation11 + $0x28] sm:$0xff]
    %v1839 = vld [vmem:[#allocation11 + $0x30] sm:$0xff]
    %v1840 = vld [vmem:[#allocation11 + $0x38] sm:$0xff]
    %v1841 = vld [vmem:[%s8] sm:$0x3]
    %v1843 = vperm.slane %v1841, 0
    %v1844 = vperm.slane %v1841, 1
    %v1848 = vsel %vm127, %v1831, 0
    %v1851 = vsel %vm127, %v1832, 0
    %1853 = vmatpush.msra.mxu0 0.0
    %1854 = vmatpush.msra.mxu0 0.0
    %1855 = vmatpush.msra.mxu0 0.0
    %1856 = vmatpush.msra.mxu0 0.0
    %1857 = vmatpush.msra.mxu0 0.0
    %1858 = vmatpush.msra.mxu0 0.0
    %1859 = vmatpush.msra.mxu0 0.0
    %1860 = vmatpush.msra.mxu0 0.0
    %1861 = vmatpush.msra.mxu0 0.0
    %1862 = vmatpush.msra.mxu0 0.0
    %1863 = vmatpush.msra.mxu0 0.0
    %1864 = vmatpush.msra.mxu0 0.0
    %1865 = vmatpush.msra.mxu0 %v1839
    %1866 = vmatpush.msra.mxu0 %v1837
    %1867 = vmatpush.msra.mxu0 %v1835
    %1868 = vmatpush.msra.mxu0 %v1833
    %1869 = vmatmul.f32.gmra.mxu0 %v1848
    %v1870 = vpop.f32.mrf.mxu0
    %v1871 = vadd.f32 %v1843, %v1870
    %1872 = vmatmul.f32.gmra.mxu0 %v1851
    %v1873 = vpop.f32.mrf.mxu0
    %v1874 = vadd.f32 %v1843, %v1873
    %1875 = vdwg.mxu0
    %1876 = vmatpush.msra.mxu0 0.0
    %1877 = vmatpush.msra.mxu0 0.0
    %1878 = vmatpush.msra.mxu0 0.0
    %1879 = vmatpush.msra.mxu0 0.0
    %1880 = vmatpush.msra.mxu0 0.0
    %1881 = vmatpush.msra.mxu0 0.0
    %1882 = vmatpush.msra.mxu0 0.0
    %1883 = vmatpush.msra.mxu0 0.0
    %1884 = vmatpush.msra.mxu0 0.0
    %1885 = vmatpush.msra.mxu0 0.0
    %1886 = vmatpush.msra.mxu0 0.0
    %1887 = vmatpush.msra.mxu0 0.0
    %1888 = vmatpush.msra.mxu0 %v1840
    %1889 = vmatpush.msra.mxu0 %v1838
    %1890 = vmatpush.msra.mxu0 %v1836
    %1891 = vmatpush.msra.mxu0 %v1834
    %1892 = vmatmul.f32.gmra.mxu0 %v1848
    %v1893 = vpop.f32.mrf.mxu0
    %v1894 = vadd.f32 %v1844, %v1893
    %1895 = vmatmul.f32.gmra.mxu0 %v1851
    %v1896 = vpop.f32.mrf.mxu0
    %v1897 = vadd.f32 %v1844, %v1896
    %1898 = vdwg.mxu0
    %v1899 = vtanh.pop %v1871
    %v1900 = vtanh.pop %v1894
    %v1901 = vtanh.pop %v1874
    %v1902 = vtanh.pop %v1897
    %v1903 = vld [vmem:[%s9] sm:$0x3]
    %v1905 = vperm.slane %v1903, 0
    %v1906 = vperm.slane %v1903, 1
    %v1909 = vmul.f32 %v1899, %v1905
    %v1910 = vmul.f32 %v1900, %v1906
    %v1911 = vmul.f32 %v1901, %v1905
    %v1912 = vmul.f32 %v1902, %v1906
    %v1913 = vadd.f32 %v1909, %v1910
    %1914 = vadd.xlane.f32.xlu0 %v1913
    %v1915 = vpop.xlane.xlu0 %1914
    %v1916 = vadd.f32 %v1911, %v1912
    %1917 = vadd.xlane.f32.xlu0 %v1916
    %v1918 = vpop.xlane.xlu0 %1917
    %v1919 = vld [vmem:[#allocation2] sm:$0x1]
    %v1921 = vperm.slane %v1919, 0
    %1922 = vset.pattern.permute.xlu0 0
    %1923 = vperm.xlu0 %1922, %v1921
    %v1924 = vpop.permute.xlu0 %1923
    %v1926 = vadd.f32 %v1915, %v1924
    %v1927 = vadd.f32 %v1918, %v1924
    %v1930 = vlaneseq
    %v1931 = vand.u32 %v1930, 127
    %v1932 = vperm.slane %v1926, %v1931
    %v1933 = vperm.slane %v1927, %v1931
    %vm1934 = vcmask 1041409
    %v1935 = vsel %vm1934, %v1933, %v1932
    %vm1937 = vcmask 58368
    %v1938 = vsel %vm1937, %v1935, -inf
    %1939 = vmax.xlane.f32.xlu0 %v1938
    %v1940 = vpop.xlane.xlu0 %1939
    %v1942 = vperm.slane %v1940, 0
    %v1943 = vperm.slane %v1940, 1
    %v1946 = vsub.f32 %v1926, %v1942
    %v1947 = vsub.f32 %v1927, %v1943
    %v1948 = vmul.f32 %v1946, 1.442695
    %v1949 = vpow.pop %v1948
    %v1950 = vmul.f32 %v1947, 1.442695
    %v1951 = vpow.pop %v1950
    %1954 = vset.pattern.permute.xlu0 0
    %1955 = vperm.xlu0 %1954, %v1949
    %v1956 = vpop.permute.xlu0 %1955
    %1957 = vset.pattern.permute.xlu0 0
    %1958 = vperm.xlu0 %1957, %v1951
    %v1959 = vpop.permute.xlu0 %1958
    %v1960 = vperm.slane %v1956, %v1931
    %v1961 = vperm.slane %v1959, %v1931
    %v1962 = vsel %vm1934, %v1961, %v1960
    %v1964 = vsel %vm1937, %v1962, 0.0
    %1965 = vadd.xlane.f32.xlu0 %v1964
    %v1966 = vpop.xlane.xlu0 %1965
    %v1968 = vperm.slane %v1966, 0
    %v1969 = vperm.slane %v1966, 1
    %v1972 = vrcp.pop %v1968
    %v1973 = vmul.f32 %v1968, %v1972
    %v1974 = vsub.f32 1.0, %v1973
    %v1975 = vmul.f32 %v1972, %v1974
    %v1976 = vadd.f32 %v1972, %v1975
    %vm1977 = vweird.f32 %v1968
    %vm1978 = vweird.f32 %v1972
    %vm1979 = vmor %vm1977, %vm1978
    %v1980 = vsel %vm1979, %v1972, %v1976
    %v1981 = vand.u32 2147483647, %v1968
    %vm1982 = vcmp.eq.f32.partialorder %v1981, 8.507059e+37
    %v1983 = vand.u32 %v1968, 2147483648
    %v1984 = vor.u32 1.1754944e-38, %v1983
    %v1985 = vsel %vm1982, %v1984, %v1980
    %v1986 = vmul.f32 %v1949, %v1985
    %v1987 = vrcp.pop %v1969
    %v1988 = vmul.f32 %v1969, %v1987
    %v1989 = vsub.f32 1.0, %v1988
    %v1990 = vmul.f32 %v1987, %v1989
    %v1991 = vadd.f32 %v1987, %v1990
    %vm1992 = vweird.f32 %v1969
    %vm1993 = vweird.f32 %v1987
    %vm1994 = vmor %vm1992, %vm1993
    %v1995 = vsel %vm1994, %v1987, %v1991
    %v1996 = vand.u32 2147483647, %v1969
    %vm1997 = vcmp.eq.f32.partialorder %v1996, 8.507059e+37
    %v1998 = vand.u32 %v1969, 2147483648
    %v1999 = vor.u32 1.1754944e-38, %v1998
    %v2000 = vsel %vm1997, %v1999, %v1995
    %v2001 = vmul.f32 %v1951, %v2000
    %2003 = vset.pattern.permute.xlu0 0
    %2004 = vperm.xlu0 %2003, %v1986
    %v2005 = vpop.permute.xlu0 %2004
    %2008 = vset.pattern.permute.xlu0 0
    %2009 = vperm.xlu0 %2008, %v2001
    %v2010 = vpop.permute.xlu0 %2009
    %v2012 = vmul.f32 %v1831, %v2005
    %v2013 = vmul.f32 %v1832, %v2010
    %v2014 = vsel %vm127, %v2012, 0.0
    %v2015 = vrot.slane %v2014, 4
    %v2016 = vadd.f32 %v2014, %v2015
    %v2017 = vrot.slane %v2016, 2
    %v2018 = vadd.f32 %v2016, %v2017
    %v2019 = vrot.slane %v2018, 1
    %v2020 = vadd.f32 %v2018, %v2019
    %v2021 = vsel %vm127, %v2013, 0.0
    %v2022 = vrot.slane %v2021, 4
    %v2023 = vadd.f32 %v2021, %v2022
    %v2024 = vrot.slane %v2023, 2
    %v2025 = vadd.f32 %v2023, %v2024
    %v2026 = vrot.slane %v2025, 1
    %v2027 = vadd.f32 %v2025, %v2026
    %v2030 = vsel %vm1934, %v2027, %v2020
    %vm2032 = vcmask 254976
    %2033 = vst.msk [vmem:[#allocation12] sm:$0x3] %vm2032, %v2030
    // Predicated region
    $region66: #{tpu_custom_call.1} parent=1 // pred_check
      _
    $region67: #{tpu_custom_call.1} parent=1 // pred_check_branch
      %2035 = sbr.rel (0) target = $region69
    $region68: #{tpu_custom_call.1} parent=1 // pred_region
      %2037 = vsyncadd [#allocation5], 0
      %s2039 = sshll.u32 [#allocation12], 4
      %s2040 = int_to_ptr.vmem [resolvable:$true] %s2039
      %s2041 = sshll.u32 %s11, 4
      %s2042 = int_to_ptr.hbm [resolvable:$true] %s2041
      %2044 = dma.vmem_to_hbm [thread:$0]  %s2040, 32, %s2042, [#allocation5]
    $region69: #{tpu_custom_call.1} parent=1 // pred_fallthru
      _
    // Predicated region
    $region70: #{tpu_custom_call.1} parent=1 // pred_check
      _
    $region71: #{tpu_custom_call.1} parent=1 // pred_check_branch
      %2046 = sbr.rel (0) target = $region73
    $region72: #{tpu_custom_call.1} parent=1 // pred_region
      %2048 = dma.done [#allocation5], 32
    $region73: #{tpu_custom_call.1} parent=1 // pred_fallthru
      _
    %2049 = vsyncpa [#allocation4], 1
    %2050 = vsyncpa [#allocation7], 1
    %2051 = vsyncpa [#allocation10], 1
    %2052 = vsyncpa [#allocation5], 1

</llo_original>
